<compile_context>
chip_gen: v7x
topology: tpu7x:2x2x1
jax: 0.10.0
libtpu: 0.0.40
codegen_flags: <defaults>
</compile_context>

<pallas_src>
import functools
import math

import jax
import jax.numpy as jnp
from jax import lax
from jax.experimental import pallas as pl
from jax.experimental.pallas import tpu as pltpu


# ----------------------------------------------------------------------------
# Helpers
# ----------------------------------------------------------------------------
def _node_tiling(mn, target=1024):
    """Lane tile (multiple of 128, capped at `target`) and padded node count.

    Pads the node axis UP to a multiple of the tile (never shrinks the tile)."""
    tn = min(target, ((mn + 127) // 128) * 128)
    mp = pl.cdiv(mn, tn) * tn
    return tn, mp


def _nbytes(shape, dtype):
    return math.prod(shape) * jnp.dtype(dtype).itemsize


def _cparams(semantics, block_bytes):
    # double-buffered I/O blocks + headroom for scratch / f32 temporaries;
    # capped at 48 MiB so v7x (64 MiB physical VMEM per TC) keeps headroom.
    need = 2 * block_bytes + (8 << 20)
    return pltpu.CompilerParams(
        dimension_semantics=semantics,
        vmem_limit_bytes=int(min(max(need, 16 << 20), 48 << 20)))


# ----------------------------------------------------------------------------
# Kernel 1: etype_net
#   center : (C0,    Mn_pad) bf16      (node feature)
#   nbr    : (K, C0, Mn_pad) bf16      (gathered neighbour features)
#   out    : (K, E,  Mn_pad) bf16      (softmax over E per edge)
# Edge feature is [center ; nbr - center]; w1 is split so the center half of
# the first matmul is computed once per tile (K-invariant), the K loop only
# runs the (H, C0) @ (C0, Tn) half plus ReLU / second matmul / softmax.
# ----------------------------------------------------------------------------
def _etype_kernel(x_ref, nbr_ref, w1a_ref, w1b_ref, b1_ref, w2_ref, b2_ref,
                  out_ref):
    center = x_ref[...]                                   # (C0, Tn) bf16
    # K-invariant half of the first matmul, hoisted out of the K loop.
    h_c = jnp.dot(w1a_ref[...], center,
                  preferred_element_type=jnp.float32) + b1_ref[...]  # (H, Tn) f32
    w1b = w1b_ref[...]
    w2 = w2_ref[...]
    b2 = b2_ref[...]
    kk = out_ref.shape[0]
    for k in range(kk):                 # per-k slice/store = free leading-axis index
        d = nbr_ref[k] - center                                       # (C0, Tn) bf16
        h = h_c + jnp.dot(w1b, d, preferred_element_type=jnp.float32)
        h = jnp.maximum(h, 0.0)                                       # f32 elementwise
        logits = jnp.dot(w2, h.astype(w2.dtype),
                         preferred_element_type=jnp.float32) + b2     # (E, Tn) f32
        m = jnp.max(logits, axis=0, keepdims=True)
        ex = jnp.exp(logits - m)
        sm = ex * pl.reciprocal(jnp.sum(ex, axis=0, keepdims=True), approx=True)
        out_ref[k] = sm.astype(out_ref.dtype)


def etype_net_apply(x0, nbr0, w1, b1, w2, b2, tn):
    c0, mp = x0.shape
    kk = nbr0.shape[0]
    n_et = w2.shape[0]
    nt = mp // tn
    w1a = w1[:, :c0]                    # multiplies the center half
    w1b = w1[:, c0:]                    # multiplies the (nbr - center) half
    blk = (_nbytes((c0, tn), x0.dtype) + _nbytes((kk, c0, tn), nbr0.dtype)
           + 2 * _nbytes(w1a.shape, w1a.dtype) + _nbytes(b1.shape, b1.dtype)
           + _nbytes(w2.shape, w2.dtype) + _nbytes(b2.shape, b2.dtype)
           + _nbytes((kk, n_et, tn), jnp.bfloat16))
    return pl.pallas_call(
        _etype_kernel,
        grid=(nt,),
        in_specs=[
            pl.BlockSpec((c0, tn), lambda t: (0, t)),
            pl.BlockSpec((kk, c0, tn), lambda t: (0, 0, t)),
            pl.BlockSpec(w1a.shape, lambda t: (0, 0)),
            pl.BlockSpec(w1b.shape, lambda t: (0, 0)),
            pl.BlockSpec(b1.shape, lambda t: (0, 0)),
            pl.BlockSpec(w2.shape, lambda t: (0, 0)),
            pl.BlockSpec(b2.shape, lambda t: (0, 0)),
        ],
        out_specs=pl.BlockSpec((kk, n_et, tn), lambda t: (0, 0, t)),
        out_shape=jax.ShapeDtypeStruct((kk, n_et, mp), jnp.bfloat16),
        compiler_params=_cparams(("parallel",), blk),
    )(x0, nbr0, w1a, w1b, b1, w2, b2)


# ----------------------------------------------------------------------------
# Kernel 2: dim_change_conv — per-agent 1x1 conv (+ optional ReLU)
# Grid is (node_tile, agent) so a shared input x is streamed once per tile,
# not once per agent.
# ----------------------------------------------------------------------------
def _dim_change_kernel(x_ref, w_ref, b_ref, o_ref, *, withrelu):
    y = jnp.dot(w_ref[0], x_ref[0], preferred_element_type=jnp.float32) + b_ref[0]
    if withrelu:
        y = jnp.maximum(y, 0.0)
    o_ref[0] = y.astype(o_ref.dtype)


def dim_change_apply(x, w, b, withrelu, anum, tn):
    ax, cin, mp = x.shape
    cout = w.shape[1]
    nt = mp // tn
    x_map = (lambda t, a: (0, 0, t)) if ax == 1 else (lambda t, a: (a, 0, t))
    blk = (_nbytes((1, cin, tn), x.dtype) + _nbytes((1, cout, cin), w.dtype)
           + _nbytes((1, cout, 1), b.dtype) + _nbytes((1, cout, tn), jnp.bfloat16))
    return pl.pallas_call(
        functools.partial(_dim_change_kernel, withrelu=withrelu),
        grid=(nt, anum),
        in_specs=[
            pl.BlockSpec((1, cin, tn), x_map),
            pl.BlockSpec((1, cout, cin), lambda t, a: (a, 0, 0)),
            pl.BlockSpec((1, cout, 1), lambda t, a: (a, 0, 0)),
        ],
        out_specs=pl.BlockSpec((1, cout, tn), lambda t, a: (a, 0, t)),
        out_shape=jax.ShapeDtypeStruct((anum, cout, mp), jnp.bfloat16),
        compiler_params=_cparams(("parallel", "parallel"), blk),
    )(x, w, b)


# ----------------------------------------------------------------------------
# Kernel 3: res_gnn_layer — edge-type conditioned messages, mean over K,
#           self transform, ReLU, residual.
#
# Algebraic refactor (linearity):
#   agg = (1/K) sum_k sum_e et[e,k] * (W_e @ nbr_k)
#       = W_cat @ Z   with  Z[e*C + c', n] = (1/K) sum_k et[e,k,n] * nbr[c',k,n]
# Z is built with E small f32 VPU accumulators (fori_loop over K, single (C,Tn)
# carry -> bounded live ranges), stored bf16 in a VMEM scratch, then ONE MXU
# matmul with contraction E*C.  When x/nbr are still shared across agents
# (ax == 1) Z is computed only at agent index 0 and reused (agent axis is the
# innermost, "arbitrary" grid axis, so the scratch persists).
# ----------------------------------------------------------------------------
def _res_gnn_kernel(x_ref, nbr_ref, et_ref, wcat_ref, ws_ref, b_ref, o_ref,
                    z_ref, *, shared_nbr):
    c = x_ref.shape[1]
    tn = x_ref.shape[2]
    kk = nbr_ref.shape[1]
    n_et = et_ref.shape[1]
    inv_k = 1.0 / kk

    def compute_z():
        for e in range(n_et):
            def body(k, acc):
                w = et_ref[k, e:e + 1, :].astype(jnp.float32)        # (1, Tn)
                return acc + w * nbr_ref[0, k].astype(jnp.float32)   # (C, Tn)
            z_e = lax.fori_loop(0, kk, body,
                                jnp.zeros((c, tn), jnp.float32), unroll=True)
            z_ref[e * c:(e + 1) * c, :] = (z_e * inv_k).astype(z_ref.dtype)

    if shared_nbr:
        # nbr / et are agent-independent -> compute Z once per node tile.
        pl.when(pl.program_id(1) == 0)(compute_z)
    else:
        compute_z()

    x = x_ref[0]
    agg = jnp.dot(wcat_ref[0], z_ref[...], preferred_element_type=jnp.float32)
    h = jnp.dot(ws_ref[0], x, preferred_element_type=jnp.float32) + b_ref[0] + agg
    o_ref[0] = (jnp.maximum(h, 0.0) + x.astype(jnp.float32)).astype(o_ref.dtype)


def res_gnn_apply(x, nbr, etype, wcat, ws, b, anum, tn):
    ax, c, mp = x.shape
    kk, n_et = etype.shape[0], etype.shape[1]
    nt = mp // tn
    shared_nbr = (ax == 1)
    x_map = (lambda t, a: (0, 0, t)) if shared_nbr else (lambda t, a: (a, 0, t))
    n_map = (lambda t, a: (0, 0, 0, t)) if shared_nbr else (lambda t, a: (a, 0, 0, t))
    blk = (_nbytes((1, c, tn), x.dtype) + _nbytes((1, kk, c, tn), nbr.dtype)
           + _nbytes((kk, n_et, tn), etype.dtype)
           + _nbytes((1, c, n_et * c), wcat.dtype) + _nbytes((1, c, c), ws.dtype)
           + _nbytes((1, c, 1), b.dtype) + _nbytes((1, c, tn), jnp.bfloat16)
           + _nbytes((n_et * c, tn), jnp.bfloat16))
    semantics = ("parallel", "arbitrary") if shared_nbr else ("parallel", "parallel")
    return pl.pallas_call(
        functools.partial(_res_gnn_kernel, shared_nbr=shared_nbr),
        grid=(nt, anum),
        in_specs=[
            pl.BlockSpec((1, c, tn), x_map),
            pl.BlockSpec((1, kk, c, tn), n_map),
            pl.BlockSpec((kk, n_et, tn), lambda t, a: (0, 0, t)),
            pl.BlockSpec((1, c, n_et * c), lambda t, a: (a, 0, 0)),
            pl.BlockSpec((1, c, c), lambda t, a: (a, 0, 0)),
            pl.BlockSpec((1, c, 1), lambda t, a: (a, 0, 0)),
        ],
        out_specs=pl.BlockSpec((1, c, tn), lambda t, a: (a, 0, t)),
        out_shape=jax.ShapeDtypeStruct((anum, c, mp), jnp.bfloat16),
        scratch_shapes=[pltpu.VMEM((n_et * c, tn), jnp.bfloat16)],
        compiler_params=_cparams(semantics, blk),
    )(x, nbr, etype, wcat, ws, b)


# ----------------------------------------------------------------------------
# Parameter construction (mirrors agent_select.__init__); weights in bf16,
# biases in f32; per-edge-type weights horizontally stacked to (C, E*C).
# ----------------------------------------------------------------------------
def _lin(key, cout, cin, scale=1.0):
    kw, kb = jax.random.split(key)
    w = jax.random.normal(kw, (cout, cin), jnp.float32) * (scale / jnp.sqrt(cin))
    b = jax.random.normal(kb, (cout, 1), jnp.float32) * 0.01
    return w.astype(jnp.bfloat16), b


def init_agent_select_params(key, hidden_size, etypes, anum):
    efeat_dim, n_etypes = etypes
    n_layers = len(hidden_size) - 1
    keys = jax.random.split(key, 2 + n_layers)

    w1, b1 = _lin(keys[0], efeat_dim, efeat_dim)        # etype_net hidden
    w2, b2 = _lin(keys[1], n_etypes, efeat_dim)         # etype_net out
    params = {"etype": (w1, b1, w2, b2), "layers": []}

    before_gnn = True
    for l in range(n_layers):
        nin, nout = hidden_size[l], hidden_size[l + 1]
        k = keys[2 + l]
        if nin == nout:
            ka, kb, kc = jax.random.split(k, 3)
            we = (jax.random.normal(ka, (anum, n_etypes, nout, nin), jnp.float32)
                  / jnp.sqrt(nin * 1.0))
            # W_cat[a, c, e*nin + c'] = W[a, e, c, c']  (horizontal stack)
            wcat = jnp.transpose(we, (0, 2, 1, 3)).reshape(
                anum, nout, n_etypes * nin).astype(jnp.bfloat16)
            ws = (jax.random.normal(kb, (anum, nout, nin), jnp.float32)
                  / jnp.sqrt(nin * 1.0)).astype(jnp.bfloat16)
            bb = jax.random.normal(kc, (anum, nout, 1), jnp.float32) * 0.01
            params["layers"].append({"type": "res_gnn", "params": (wcat, ws, bb)})
            before_gnn = False
        else:
            kw, kbb = jax.random.split(k)
            w = (jax.random.normal(kw, (anum, nout, nin), jnp.float32)
                 / jnp.sqrt(nin * 1.0)).astype(jnp.bfloat16)
            bb = jax.random.normal(kbb, (anum, nout, 1), jnp.float32) * 0.01
            params["layers"].append({"type": "dim_change", "params": (w, bb),
                                     "withrelu": before_gnn})
    return params


# ----------------------------------------------------------------------------
# Forward pass (mirrors agent_select.forward)
# ----------------------------------------------------------------------------
def agent_select_forward(params, pts, nn_idx, anum):
    B, C0, N = pts.shape
    K = nn_idx.shape[-1]
    Mn = B * N
    tn, mn_pad = _node_tiling(Mn)

    # node features channel-major, node axis padded lane-dense (multiple of tile)
    x0 = jnp.transpose(pts, (1, 0, 2)).reshape(C0, Mn)
    x0 = jnp.pad(x0, ((0, 0), (0, mn_pad - Mn)))
    x0_bf = x0.astype(jnp.bfloat16)

    # global neighbour indices into the flat node axis, K-leading layout (K, Mn_pad)
    gidx = (jnp.arange(B)[:, None, None] * N + nn_idx).reshape(Mn, K).T
    gidx = jnp.pad(gidx, ((0, 0), (0, mn_pad - Mn)))    # pads gather node 0 (benign)

    # get_nn_node_feature: gather stays as XLA glue (K-leading, bf16)
    nbr0 = jnp.swapaxes(x0_bf[:, gidx], 0, 1)           # (K, C0, Mn_pad)

    # get_edge_feature + etype_net: center/neighbour streamed separately
    # (no HBM [center ; nbr-center] concat); shared by all agents.
    w1, b1, w2, b2 = params["etype"]
    etype = etype_net_apply(x0_bf, nbr0, w1, b1, w2, b2, tn)   # (K, E, Mn_pad) bf16

    # nfeature: kept shared (leading dim 1) until the first per-agent layer
    x = x0_bf[None]                                     # (1, C0, Mn_pad)

    for layer in params["layers"]:
        if layer["type"] == "dim_change":
            w, b = layer["params"]
            x = dim_change_apply(x, w, b, layer["withrelu"], anum, tn)
        else:
            wcat, ws, b = layer["params"]
            # TODO(synk): neighbour gather stays as XLA glue (K-leading, bf16);
            # fusing it in-kernel needs a data-dependent lane gather / DMA.
            nbr = jnp.swapaxes(x[:, :, gidx], 1, 2)     # (ax, K, C, Mn_pad)
            x = res_gnn_apply(x, nbr, etype, wcat, ws, b, anum, tn)

    if x.shape[0] == 1:                                 # no per-agent layer ran
        x = jnp.broadcast_to(x, (anum,) + x.shape[1:])
    c_last = x.shape[1]
    out = x[:, :, :Mn].astype(jnp.float32).reshape(anum, c_last, B, N)
    return jnp.transpose(out, (2, 0, 1, 3))[..., None]  # (B, anum, C_out, N, 1)


# ----------------------------------------------------------------------------
if __name__ == "__main__":
    B, N, K = 2, 16, 8
    hidden_size = [8, 16, 16]          # dim_change_conv(8->16) then res_gnn_layer(16)
    anum = 2
    etypes = (2 * hidden_size[0], 4)   # (edge-feature dim, number of edge types)

    key = jax.random.PRNGKey(0)
    k_pts, k_idx, k_par = jax.random.split(key, 3)
    pts = jax.random.normal(k_pts, (B, hidden_size[0], N), jnp.float32)
    nn_idx = jax.random.randint(k_idx, (B, N, K), 0, N, dtype=jnp.int32)

    params = init_agent_select_params(k_par, hidden_size, etypes, anum)

    out = agent_select_forward(params, pts, nn_idx, anum)
    out = jax.block_until_ready(out)
    assert out.shape == (B, anum, hidden_size[-1], N, 1), out.shape
    assert bool(jnp.all(jnp.isfinite(out)))
    print("KERNEL_OK")
</pallas_src>

<mosaic_0001>
module attributes {stable_mosaic.version = 11 : i64} {
  func.func @_etype_kernel(%arg0: i32, %arg1: memref<8x128xbf16, #tpu.memory_space<vmem>>, %arg2: memref<8x8x128xbf16, #tpu.memory_space<vmem>>, %arg3: memref<16x8xbf16, #tpu.memory_space<vmem>>, %arg4: memref<16x8xbf16, #tpu.memory_space<vmem>>, %arg5: memref<16x1xf32, #tpu.memory_space<vmem>>, %arg6: memref<4x16xbf16, #tpu.memory_space<vmem>>, %arg7: memref<4x1xf32, #tpu.memory_space<vmem>>, %arg8: memref<8x4x128xbf16, #tpu.memory_space<vmem>>) attributes {dimension_semantics = [#tpu.dimension_semantics<parallel>], iteration_bounds = array<i64: 1>, scalar_prefetch = 0 : i64, scratch_operands = 0 : i64, tpu.core_type = #tpu.core_type<tc>, window_params = [{transform_indices = @transform_0, window_bounds = array<i64: 8, 128>}, {transform_indices = @transform_1, window_bounds = array<i64: 8, 8, 128>}, {pipeline_mode = #tpu.pipeline_mode<synchronous>, transform_indices = @transform_2, window_bounds = array<i64: 16, 8>}, {pipeline_mode = #tpu.pipeline_mode<synchronous>, transform_indices = @transform_3, window_bounds = array<i64: 16, 8>}, {pipeline_mode = #tpu.pipeline_mode<synchronous>, transform_indices = @transform_4, window_bounds = array<i64: 16, 1>}, {pipeline_mode = #tpu.pipeline_mode<synchronous>, transform_indices = @transform_5, window_bounds = array<i64: 4, 16>}, {pipeline_mode = #tpu.pipeline_mode<synchronous>, transform_indices = @transform_6, window_bounds = array<i64: 4, 1>}, {transform_indices = @transform_7, window_bounds = array<i64: 8, 4, 128>}]} {
    %c0 = arith.constant 0 : index
    %c0_0 = arith.constant 0 : index
    %0 = vector.load %arg1[%c0, %c0_0] : memref<8x128xbf16, #tpu.memory_space<vmem>>, vector<8x128xbf16>
    %c0_1 = arith.constant 0 : index
    %c0_2 = arith.constant 0 : index
    %1 = vector.load %arg3[%c0_1, %c0_2] : memref<16x8xbf16, #tpu.memory_space<vmem>>, vector<16x8xbf16>
    %cst = arith.constant dense<0.000000e+00> : vector<16x128xf32>
    %2 = tpu.matmul %1, %0, %cst {dimension_numbers = #tpu.dot_dimension_numbers<[1], [0], [0], [1], [0, 0, 1, 1], [], []>} : vector<16x8xbf16>, vector<8x128xbf16>, vector<16x128xf32> -> vector<16x128xf32>
    %c0_3 = arith.constant 0 : index
    %c0_4 = arith.constant 0 : index
    %3 = vector.load %arg5[%c0_3, %c0_4] : memref<16x1xf32, #tpu.memory_space<vmem>>, vector<16x1xf32>
    %4 = vector.broadcast %3 : vector<16x1xf32> to vector<16x128xf32>
    %5 = arith.addf %2, %4 : vector<16x128xf32>
    %c0_5 = arith.constant 0 : index
    %c0_6 = arith.constant 0 : index
    %6 = vector.load %arg4[%c0_5, %c0_6] : memref<16x8xbf16, #tpu.memory_space<vmem>>, vector<16x8xbf16>
    %c0_7 = arith.constant 0 : index
    %c0_8 = arith.constant 0 : index
    %7 = vector.load %arg6[%c0_7, %c0_8] : memref<4x16xbf16, #tpu.memory_space<vmem>>, vector<4x16xbf16>
    %c0_9 = arith.constant 0 : index
    %c0_10 = arith.constant 0 : index
    %8 = vector.load %arg7[%c0_9, %c0_10] : memref<4x1xf32, #tpu.memory_space<vmem>>, vector<4x1xf32>
    %c0_11 = arith.constant 0 : index
    %c0_12 = arith.constant 0 : index
    %c0_13 = arith.constant 0 : index
    %9 = vector.load %arg2[%c0_11, %c0_12, %c0_13] : memref<8x8x128xbf16, #tpu.memory_space<vmem>>, vector<1x8x128xbf16>
    %10 = vector.shape_cast %9 : vector<1x8x128xbf16> to vector<8x128xbf16>
    %11 = arith.subf %10, %0 : vector<8x128xbf16>
    %cst_14 = arith.constant dense<0.000000e+00> : vector<16x128xf32>
    %12 = tpu.matmul %6, %11, %cst_14 {dimension_numbers = #tpu.dot_dimension_numbers<[1], [0], [0], [1], [0, 0, 1, 1], [], []>} : vector<16x8xbf16>, vector<8x128xbf16>, vector<16x128xf32> -> vector<16x128xf32>
    %13 = arith.addf %5, %12 : vector<16x128xf32>
    %cst_15 = arith.constant 0.000000e+00 : f32
    %14 = vector.broadcast %cst_15 : f32 to vector<16x128xf32>
    %15 = arith.maximumf %13, %14 : vector<16x128xf32>
    %16 = arith.truncf %15 : vector<16x128xf32> to vector<16x128xbf16>
    %cst_16 = arith.constant dense<0.000000e+00> : vector<4x128xf32>
    %17 = tpu.matmul %7, %16, %cst_16 {dimension_numbers = #tpu.dot_dimension_numbers<[1], [0], [0], [1], [0, 0, 1, 1], [], []>} : vector<4x16xbf16>, vector<16x128xbf16>, vector<4x128xf32> -> vector<4x128xf32>
    %18 = vector.broadcast %8 : vector<4x1xf32> to vector<4x128xf32>
    %19 = arith.addf %17, %18 : vector<4x128xf32>
    %cst_17 = arith.constant dense<0xFF800000> : vector<128xf32>
    %20 = vector.multi_reduction <maximumf>, %19, %cst_17 [0] : vector<4x128xf32> to vector<128xf32>
    %21 = vector.shape_cast %20 : vector<128xf32> to vector<1x128xf32>
    %22 = vector.broadcast %21 : vector<1x128xf32> to vector<4x128xf32>
    %23 = arith.subf %19, %22 : vector<4x128xf32>
    %24 = math.exp %23 : vector<4x128xf32>
    %cst_18 = arith.constant dense<0.000000e+00> : vector<128xf32>
    %25 = vector.multi_reduction <add>, %24, %cst_18 [0] : vector<4x128xf32> to vector<128xf32>
    %26 = vector.shape_cast %25 : vector<128xf32> to vector<1x128xf32>
    %27 = tpu.reciprocal %26 {approx = true} : vector<1x128xf32> -> vector<1x128xf32>
    %28 = vector.broadcast %27 : vector<1x128xf32> to vector<4x128xf32>
    %29 = arith.mulf %24, %28 : vector<4x128xf32>
    %30 = arith.truncf %29 : vector<4x128xf32> to vector<4x128xbf16>
    %c0_19 = arith.constant 0 : index
    %c0_20 = arith.constant 0 : index
    %c0_21 = arith.constant 0 : index
    %31 = vector.load %arg8[%c0_19, %c0_20, %c0_21] : memref<8x4x128xbf16, #tpu.memory_space<vmem>>, vector<1x4x128xbf16>
    %32 = vector.shape_cast %31 : vector<1x4x128xbf16> to vector<4x128xbf16>
    %33 = vector.shape_cast %30 : vector<4x128xbf16> to vector<1x4x128xbf16>
    tpu.vector_store %arg8[%c0_19, %c0_20, %c0_21], %33 {strides = array<i32>} : memref<8x4x128xbf16, #tpu.memory_space<vmem>>, vector<1x4x128xbf16>,
    %c1 = arith.constant 1 : index
    %c0_22 = arith.constant 0 : index
    %c0_23 = arith.constant 0 : index
    %34 = vector.load %arg2[%c1, %c0_22, %c0_23] : memref<8x8x128xbf16, #tpu.memory_space<vmem>>, vector<1x8x128xbf16>
    %35 = vector.shape_cast %34 : vector<1x8x128xbf16> to vector<8x128xbf16>
    %36 = arith.subf %35, %0 : vector<8x128xbf16>
    %cst_24 = arith.constant dense<0.000000e+00> : vector<16x128xf32>
    %37 = tpu.matmul %6, %36, %cst_24 {dimension_numbers = #tpu.dot_dimension_numbers<[1], [0], [0], [1], [0, 0, 1, 1], [], []>} : vector<16x8xbf16>, vector<8x128xbf16>, vector<16x128xf32> -> vector<16x128xf32>
    %38 = arith.addf %5, %37 : vector<16x128xf32>
    %cst_25 = arith.constant 0.000000e+00 : f32
    %39 = vector.broadcast %cst_25 : f32 to vector<16x128xf32>
    %40 = arith.maximumf %38, %39 : vector<16x128xf32>
    %41 = arith.truncf %40 : vector<16x128xf32> to vector<16x128xbf16>
    %cst_26 = arith.constant dense<0.000000e+00> : vector<4x128xf32>
    %42 = tpu.matmul %7, %41, %cst_26 {dimension_numbers = #tpu.dot_dimension_numbers<[1], [0], [0], [1], [0, 0, 1, 1], [], []>} : vector<4x16xbf16>, vector<16x128xbf16>, vector<4x128xf32> -> vector<4x128xf32>
    %43 = vector.broadcast %8 : vector<4x1xf32> to vector<4x128xf32>
    %44 = arith.addf %42, %43 : vector<4x128xf32>
    %cst_27 = arith.constant dense<0xFF800000> : vector<128xf32>
    %45 = vector.multi_reduction <maximumf>, %44, %cst_27 [0] : vector<4x128xf32> to vector<128xf32>
    %46 = vector.shape_cast %45 : vector<128xf32> to vector<1x128xf32>
    %47 = vector.broadcast %46 : vector<1x128xf32> to vector<4x128xf32>
    %48 = arith.subf %44, %47 : vector<4x128xf32>
    %49 = math.exp %48 : vector<4x128xf32>
    %cst_28 = arith.constant dense<0.000000e+00> : vector<128xf32>
    %50 = vector.multi_reduction <add>, %49, %cst_28 [0] : vector<4x128xf32> to vector<128xf32>
    %51 = vector.shape_cast %50 : vector<128xf32> to vector<1x128xf32>
    %52 = tpu.reciprocal %51 {approx = true} : vector<1x128xf32> -> vector<1x128xf32>
    %53 = vector.broadcast %52 : vector<1x128xf32> to vector<4x128xf32>
    %54 = arith.mulf %49, %53 : vector<4x128xf32>
    %55 = arith.truncf %54 : vector<4x128xf32> to vector<4x128xbf16>
    %c1_29 = arith.constant 1 : index
    %c0_30 = arith.constant 0 : index
    %c0_31 = arith.constant 0 : index
    %56 = vector.load %arg8[%c1_29, %c0_30, %c0_31] : memref<8x4x128xbf16, #tpu.memory_space<vmem>>, vector<1x4x128xbf16>
    %57 = vector.shape_cast %56 : vector<1x4x128xbf16> to vector<4x128xbf16>
    %58 = vector.shape_cast %55 : vector<4x128xbf16> to vector<1x4x128xbf16>
    tpu.vector_store %arg8[%c1_29, %c0_30, %c0_31], %58 {strides = array<i32>} : memref<8x4x128xbf16, #tpu.memory_space<vmem>>, vector<1x4x128xbf16>,
    %c2 = arith.constant 2 : index
    %c0_32 = arith.constant 0 : index
    %c0_33 = arith.constant 0 : index
    %59 = vector.load %arg2[%c2, %c0_32, %c0_33] : memref<8x8x128xbf16, #tpu.memory_space<vmem>>, vector<1x8x128xbf16>
    %60 = vector.shape_cast %59 : vector<1x8x128xbf16> to vector<8x128xbf16>
    %61 = arith.subf %60, %0 : vector<8x128xbf16>
    %cst_34 = arith.constant dense<0.000000e+00> : vector<16x128xf32>
    %62 = tpu.matmul %6, %61, %cst_34 {dimension_numbers = #tpu.dot_dimension_numbers<[1], [0], [0], [1], [0, 0, 1, 1], [], []>} : vector<16x8xbf16>, vector<8x128xbf16>, vector<16x128xf32> -> vector<16x128xf32>
    %63 = arith.addf %5, %62 : vector<16x128xf32>
    %cst_35 = arith.constant 0.000000e+00 : f32
    %64 = vector.broadcast %cst_35 : f32 to vector<16x128xf32>
    %65 = arith.maximumf %63, %64 : vector<16x128xf32>
    %66 = arith.truncf %65 : vector<16x128xf32> to vector<16x128xbf16>
    %cst_36 = arith.constant dense<0.000000e+00> : vector<4x128xf32>
    %67 = tpu.matmul %7, %66, %cst_36 {dimension_numbers = #tpu.dot_dimension_numbers<[1], [0], [0], [1], [0, 0, 1, 1], [], []>} : vector<4x16xbf16>, vector<16x128xbf16>, vector<4x128xf32> -> vector<4x128xf32>
    %68 = vector.broadcast %8 : vector<4x1xf32> to vector<4x128xf32>
    %69 = arith.addf %67, %68 : vector<4x128xf32>
    %cst_37 = arith.constant dense<0xFF800000> : vector<128xf32>
    %70 = vector.multi_reduction <maximumf>, %69, %cst_37 [0] : vector<4x128xf32> to vector<128xf32>
    %71 = vector.shape_cast %70 : vector<128xf32> to vector<1x128xf32>
    %72 = vector.broadcast %71 : vector<1x128xf32> to vector<4x128xf32>
    %73 = arith.subf %69, %72 : vector<4x128xf32>
    %74 = math.exp %73 : vector<4x128xf32>
    %cst_38 = arith.constant dense<0.000000e+00> : vector<128xf32>
    %75 = vector.multi_reduction <add>, %74, %cst_38 [0] : vector<4x128xf32> to vector<128xf32>
    %76 = vector.shape_cast %75 : vector<128xf32> to vector<1x128xf32>
    %77 = tpu.reciprocal %76 {approx = true} : vector<1x128xf32> -> vector<1x128xf32>
    %78 = vector.broadcast %77 : vector<1x128xf32> to vector<4x128xf32>
    %79 = arith.mulf %74, %78 : vector<4x128xf32>
    %80 = arith.truncf %79 : vector<4x128xf32> to vector<4x128xbf16>
    %c2_39 = arith.constant 2 : index
    %c0_40 = arith.constant 0 : index
    %c0_41 = arith.constant 0 : index
    %81 = vector.load %arg8[%c2_39, %c0_40, %c0_41] : memref<8x4x128xbf16, #tpu.memory_space<vmem>>, vector<1x4x128xbf16>
    %82 = vector.shape_cast %81 : vector<1x4x128xbf16> to vector<4x128xbf16>
    %83 = vector.shape_cast %80 : vector<4x128xbf16> to vector<1x4x128xbf16>
    tpu.vector_store %arg8[%c2_39, %c0_40, %c0_41], %83 {strides = array<i32>} : memref<8x4x128xbf16, #tpu.memory_space<vmem>>, vector<1x4x128xbf16>,
    %c3 = arith.constant 3 : index
    %c0_42 = arith.constant 0 : index
    %c0_43 = arith.constant 0 : index
    %84 = vector.load %arg2[%c3, %c0_42, %c0_43] : memref<8x8x128xbf16, #tpu.memory_space<vmem>>, vector<1x8x128xbf16>
    %85 = vector.shape_cast %84 : vector<1x8x128xbf16> to vector<8x128xbf16>
    %86 = arith.subf %85, %0 : vector<8x128xbf16>
    %cst_44 = arith.constant dense<0.000000e+00> : vector<16x128xf32>
    %87 = tpu.matmul %6, %86, %cst_44 {dimension_numbers = #tpu.dot_dimension_numbers<[1], [0], [0], [1], [0, 0, 1, 1], [], []>} : vector<16x8xbf16>, vector<8x128xbf16>, vector<16x128xf32> -> vector<16x128xf32>
    %88 = arith.addf %5, %87 : vector<16x128xf32>
    %cst_45 = arith.constant 0.000000e+00 : f32
    %89 = vector.broadcast %cst_45 : f32 to vector<16x128xf32>
    %90 = arith.maximumf %88, %89 : vector<16x128xf32>
    %91 = arith.truncf %90 : vector<16x128xf32> to vector<16x128xbf16>
    %cst_46 = arith.constant dense<0.000000e+00> : vector<4x128xf32>
    %92 = tpu.matmul %7, %91, %cst_46 {dimension_numbers = #tpu.dot_dimension_numbers<[1], [0], [0], [1], [0, 0, 1, 1], [], []>} : vector<4x16xbf16>, vector<16x128xbf16>, vector<4x128xf32> -> vector<4x128xf32>
    %93 = vector.broadcast %8 : vector<4x1xf32> to vector<4x128xf32>
    %94 = arith.addf %92, %93 : vector<4x128xf32>
    %cst_47 = arith.constant dense<0xFF800000> : vector<128xf32>
    %95 = vector.multi_reduction <maximumf>, %94, %cst_47 [0] : vector<4x128xf32> to vector<128xf32>
    %96 = vector.shape_cast %95 : vector<128xf32> to vector<1x128xf32>
    %97 = vector.broadcast %96 : vector<1x128xf32> to vector<4x128xf32>
    %98 = arith.subf %94, %97 : vector<4x128xf32>
    %99 = math.exp %98 : vector<4x128xf32>
    %cst_48 = arith.constant dense<0.000000e+00> : vector<128xf32>
    %100 = vector.multi_reduction <add>, %99, %cst_48 [0] : vector<4x128xf32> to vector<128xf32>
    %101 = vector.shape_cast %100 : vector<128xf32> to vector<1x128xf32>
    %102 = tpu.reciprocal %101 {approx = true} : vector<1x128xf32> -> vector<1x128xf32>
    %103 = vector.broadcast %102 : vector<1x128xf32> to vector<4x128xf32>
    %104 = arith.mulf %99, %103 : vector<4x128xf32>
    %105 = arith.truncf %104 : vector<4x128xf32> to vector<4x128xbf16>
    %c3_49 = arith.constant 3 : index
    %c0_50 = arith.constant 0 : index
    %c0_51 = arith.constant 0 : index
    %106 = vector.load %arg8[%c3_49, %c0_50, %c0_51] : memref<8x4x128xbf16, #tpu.memory_space<vmem>>, vector<1x4x128xbf16>
    %107 = vector.shape_cast %106 : vector<1x4x128xbf16> to vector<4x128xbf16>
    %108 = vector.shape_cast %105 : vector<4x128xbf16> to vector<1x4x128xbf16>
    tpu.vector_store %arg8[%c3_49, %c0_50, %c0_51], %108 {strides = array<i32>} : memref<8x4x128xbf16, #tpu.memory_space<vmem>>, vector<1x4x128xbf16>,
    %c4 = arith.constant 4 : index
    %c0_52 = arith.constant 0 : index
    %c0_53 = arith.constant 0 : index
    %109 = vector.load %arg2[%c4, %c0_52, %c0_53] : memref<8x8x128xbf16, #tpu.memory_space<vmem>>, vector<1x8x128xbf16>
    %110 = vector.shape_cast %109 : vector<1x8x128xbf16> to vector<8x128xbf16>
    %111 = arith.subf %110, %0 : vector<8x128xbf16>
    %cst_54 = arith.constant dense<0.000000e+00> : vector<16x128xf32>
    %112 = tpu.matmul %6, %111, %cst_54 {dimension_numbers = #tpu.dot_dimension_numbers<[1], [0], [0], [1], [0, 0, 1, 1], [], []>} : vector<16x8xbf16>, vector<8x128xbf16>, vector<16x128xf32> -> vector<16x128xf32>
    %113 = arith.addf %5, %112 : vector<16x128xf32>
    %cst_55 = arith.constant 0.000000e+00 : f32
    %114 = vector.broadcast %cst_55 : f32 to vector<16x128xf32>
    %115 = arith.maximumf %113, %114 : vector<16x128xf32>
    %116 = arith.truncf %115 : vector<16x128xf32> to vector<16x128xbf16>
    %cst_56 = arith.constant dense<0.000000e+00> : vector<4x128xf32>
    %117 = tpu.matmul %7, %116, %cst_56 {dimension_numbers = #tpu.dot_dimension_numbers<[1], [0], [0], [1], [0, 0, 1, 1], [], []>} : vector<4x16xbf16>, vector<16x128xbf16>, vector<4x128xf32> -> vector<4x128xf32>
    %118 = vector.broadcast %8 : vector<4x1xf32> to vector<4x128xf32>
    %119 = arith.addf %117, %118 : vector<4x128xf32>
    %cst_57 = arith.constant dense<0xFF800000> : vector<128xf32>
    %120 = vector.multi_reduction <maximumf>, %119, %cst_57 [0] : vector<4x128xf32> to vector<128xf32>
    %121 = vector.shape_cast %120 : vector<128xf32> to vector<1x128xf32>
    %122 = vector.broadcast %121 : vector<1x128xf32> to vector<4x128xf32>
    %123 = arith.subf %119, %122 : vector<4x128xf32>
    %124 = math.exp %123 : vector<4x128xf32>
    %cst_58 = arith.constant dense<0.000000e+00> : vector<128xf32>
    %125 = vector.multi_reduction <add>, %124, %cst_58 [0] : vector<4x128xf32> to vector<128xf32>
    %126 = vector.shape_cast %125 : vector<128xf32> to vector<1x128xf32>
    %127 = tpu.reciprocal %126 {approx = true} : vector<1x128xf32> -> vector<1x128xf32>
    %128 = vector.broadcast %127 : vector<1x128xf32> to vector<4x128xf32>
    %129 = arith.mulf %124, %128 : vector<4x128xf32>
    %130 = arith.truncf %129 : vector<4x128xf32> to vector<4x128xbf16>
    %c4_59 = arith.constant 4 : index
    %c0_60 = arith.constant 0 : index
    %c0_61 = arith.constant 0 : index
    %131 = vector.load %arg8[%c4_59, %c0_60, %c0_61] : memref<8x4x128xbf16, #tpu.memory_space<vmem>>, vector<1x4x128xbf16>
    %132 = vector.shape_cast %131 : vector<1x4x128xbf16> to vector<4x128xbf16>
    %133 = vector.shape_cast %130 : vector<4x128xbf16> to vector<1x4x128xbf16>
    tpu.vector_store %arg8[%c4_59, %c0_60, %c0_61], %133 {strides = array<i32>} : memref<8x4x128xbf16, #tpu.memory_space<vmem>>, vector<1x4x128xbf16>,
    %c5 = arith.constant 5 : index
    %c0_62 = arith.constant 0 : index
    %c0_63 = arith.constant 0 : index
    %134 = vector.load %arg2[%c5, %c0_62, %c0_63] : memref<8x8x128xbf16, #tpu.memory_space<vmem>>, vector<1x8x128xbf16>
    %135 = vector.shape_cast %134 : vector<1x8x128xbf16> to vector<8x128xbf16>
    %136 = arith.subf %135, %0 : vector<8x128xbf16>
    %cst_64 = arith.constant dense<0.000000e+00> : vector<16x128xf32>
    %137 = tpu.matmul %6, %136, %cst_64 {dimension_numbers = #tpu.dot_dimension_numbers<[1], [0], [0], [1], [0, 0, 1, 1], [], []>} : vector<16x8xbf16>, vector<8x128xbf16>, vector<16x128xf32> -> vector<16x128xf32>
    %138 = arith.addf %5, %137 : vector<16x128xf32>
    %cst_65 = arith.constant 0.000000e+00 : f32
    %139 = vector.broadcast %cst_65 : f32 to vector<16x128xf32>
    %140 = arith.maximumf %138, %139 : vector<16x128xf32>
    %141 = arith.truncf %140 : vector<16x128xf32> to vector<16x128xbf16>
    %cst_66 = arith.constant dense<0.000000e+00> : vector<4x128xf32>
    %142 = tpu.matmul %7, %141, %cst_66 {dimension_numbers = #tpu.dot_dimension_numbers<[1], [0], [0], [1], [0, 0, 1, 1], [], []>} : vector<4x16xbf16>, vector<16x128xbf16>, vector<4x128xf32> -> vector<4x128xf32>
    %143 = vector.broadcast %8 : vector<4x1xf32> to vector<4x128xf32>
    %144 = arith.addf %142, %143 : vector<4x128xf32>
    %cst_67 = arith.constant dense<0xFF800000> : vector<128xf32>
    %145 = vector.multi_reduction <maximumf>, %144, %cst_67 [0] : vector<4x128xf32> to vector<128xf32>
    %146 = vector.shape_cast %145 : vector<128xf32> to vector<1x128xf32>
    %147 = vector.broadcast %146 : vector<1x128xf32> to vector<4x128xf32>
    %148 = arith.subf %144, %147 : vector<4x128xf32>
    %149 = math.exp %148 : vector<4x128xf32>
    %cst_68 = arith.constant dense<0.000000e+00> : vector<128xf32>
    %150 = vector.multi_reduction <add>, %149, %cst_68 [0] : vector<4x128xf32> to vector<128xf32>
    %151 = vector.shape_cast %150 : vector<128xf32> to vector<1x128xf32>
    %152 = tpu.reciprocal %151 {approx = true} : vector<1x128xf32> -> vector<1x128xf32>
    %153 = vector.broadcast %152 : vector<1x128xf32> to vector<4x128xf32>
    %154 = arith.mulf %149, %153 : vector<4x128xf32>
    %155 = arith.truncf %154 : vector<4x128xf32> to vector<4x128xbf16>
    %c5_69 = arith.constant 5 : index
    %c0_70 = arith.constant 0 : index
    %c0_71 = arith.constant 0 : index
    %156 = vector.load %arg8[%c5_69, %c0_70, %c0_71] : memref<8x4x128xbf16, #tpu.memory_space<vmem>>, vector<1x4x128xbf16>
    %157 = vector.shape_cast %156 : vector<1x4x128xbf16> to vector<4x128xbf16>
    %158 = vector.shape_cast %155 : vector<4x128xbf16> to vector<1x4x128xbf16>
    tpu.vector_store %arg8[%c5_69, %c0_70, %c0_71], %158 {strides = array<i32>} : memref<8x4x128xbf16, #tpu.memory_space<vmem>>, vector<1x4x128xbf16>,
    %c6 = arith.constant 6 : index
    %c0_72 = arith.constant 0 : index
    %c0_73 = arith.constant 0 : index
    %159 = vector.load %arg2[%c6, %c0_72, %c0_73] : memref<8x8x128xbf16, #tpu.memory_space<vmem>>, vector<1x8x128xbf16>
    %160 = vector.shape_cast %159 : vector<1x8x128xbf16> to vector<8x128xbf16>
    %161 = arith.subf %160, %0 : vector<8x128xbf16>
    %cst_74 = arith.constant dense<0.000000e+00> : vector<16x128xf32>
    %162 = tpu.matmul %6, %161, %cst_74 {dimension_numbers = #tpu.dot_dimension_numbers<[1], [0], [0], [1], [0, 0, 1, 1], [], []>} : vector<16x8xbf16>, vector<8x128xbf16>, vector<16x128xf32> -> vector<16x128xf32>
    %163 = arith.addf %5, %162 : vector<16x128xf32>
    %cst_75 = arith.constant 0.000000e+00 : f32
    %164 = vector.broadcast %cst_75 : f32 to vector<16x128xf32>
    %165 = arith.maximumf %163, %164 : vector<16x128xf32>
    %166 = arith.truncf %165 : vector<16x128xf32> to vector<16x128xbf16>
    %cst_76 = arith.constant dense<0.000000e+00> : vector<4x128xf32>
    %167 = tpu.matmul %7, %166, %cst_76 {dimension_numbers = #tpu.dot_dimension_numbers<[1], [0], [0], [1], [0, 0, 1, 1], [], []>} : vector<4x16xbf16>, vector<16x128xbf16>, vector<4x128xf32> -> vector<4x128xf32>
    %168 = vector.broadcast %8 : vector<4x1xf32> to vector<4x128xf32>
    %169 = arith.addf %167, %168 : vector<4x128xf32>
    %cst_77 = arith.constant dense<0xFF800000> : vector<128xf32>
    %170 = vector.multi_reduction <maximumf>, %169, %cst_77 [0] : vector<4x128xf32> to vector<128xf32>
    %171 = vector.shape_cast %170 : vector<128xf32> to vector<1x128xf32>
    %172 = vector.broadcast %171 : vector<1x128xf32> to vector<4x128xf32>
    %173 = arith.subf %169, %172 : vector<4x128xf32>
    %174 = math.exp %173 : vector<4x128xf32>
    %cst_78 = arith.constant dense<0.000000e+00> : vector<128xf32>
    %175 = vector.multi_reduction <add>, %174, %cst_78 [0] : vector<4x128xf32> to vector<128xf32>
    %176 = vector.shape_cast %175 : vector<128xf32> to vector<1x128xf32>
    %177 = tpu.reciprocal %176 {approx = true} : vector<1x128xf32> -> vector<1x128xf32>
    %178 = vector.broadcast %177 : vector<1x128xf32> to vector<4x128xf32>
    %179 = arith.mulf %174, %178 : vector<4x128xf32>
    %180 = arith.truncf %179 : vector<4x128xf32> to vector<4x128xbf16>
    %c6_79 = arith.constant 6 : index
    %c0_80 = arith.constant 0 : index
    %c0_81 = arith.constant 0 : index
    %181 = vector.load %arg8[%c6_79, %c0_80, %c0_81] : memref<8x4x128xbf16, #tpu.memory_space<vmem>>, vector<1x4x128xbf16>
    %182 = vector.shape_cast %181 : vector<1x4x128xbf16> to vector<4x128xbf16>
    %183 = vector.shape_cast %180 : vector<4x128xbf16> to vector<1x4x128xbf16>
    tpu.vector_store %arg8[%c6_79, %c0_80, %c0_81], %183 {strides = array<i32>} : memref<8x4x128xbf16, #tpu.memory_space<vmem>>, vector<1x4x128xbf16>,
    %c7 = arith.constant 7 : index
    %c0_82 = arith.constant 0 : index
    %c0_83 = arith.constant 0 : index
    %184 = vector.load %arg2[%c7, %c0_82, %c0_83] : memref<8x8x128xbf16, #tpu.memory_space<vmem>>, vector<1x8x128xbf16>
    %185 = vector.shape_cast %184 : vector<1x8x128xbf16> to vector<8x128xbf16>
    %186 = arith.subf %185, %0 : vector<8x128xbf16>
    %cst_84 = arith.constant dense<0.000000e+00> : vector<16x128xf32>
    %187 = tpu.matmul %6, %186, %cst_84 {dimension_numbers = #tpu.dot_dimension_numbers<[1], [0], [0], [1], [0, 0, 1, 1], [], []>} : vector<16x8xbf16>, vector<8x128xbf16>, vector<16x128xf32> -> vector<16x128xf32>
    %188 = arith.addf %5, %187 : vector<16x128xf32>
    %cst_85 = arith.constant 0.000000e+00 : f32
    %189 = vector.broadcast %cst_85 : f32 to vector<16x128xf32>
    %190 = arith.maximumf %188, %189 : vector<16x128xf32>
    %191 = arith.truncf %190 : vector<16x128xf32> to vector<16x128xbf16>
    %cst_86 = arith.constant dense<0.000000e+00> : vector<4x128xf32>
    %192 = tpu.matmul %7, %191, %cst_86 {dimension_numbers = #tpu.dot_dimension_numbers<[1], [0], [0], [1], [0, 0, 1, 1], [], []>} : vector<4x16xbf16>, vector<16x128xbf16>, vector<4x128xf32> -> vector<4x128xf32>
    %193 = vector.broadcast %8 : vector<4x1xf32> to vector<4x128xf32>
    %194 = arith.addf %192, %193 : vector<4x128xf32>
    %cst_87 = arith.constant dense<0xFF800000> : vector<128xf32>
    %195 = vector.multi_reduction <maximumf>, %194, %cst_87 [0] : vector<4x128xf32> to vector<128xf32>
    %196 = vector.shape_cast %195 : vector<128xf32> to vector<1x128xf32>
    %197 = vector.broadcast %196 : vector<1x128xf32> to vector<4x128xf32>
    %198 = arith.subf %194, %197 : vector<4x128xf32>
    %199 = math.exp %198 : vector<4x128xf32>
    %cst_88 = arith.constant dense<0.000000e+00> : vector<128xf32>
    %200 = vector.multi_reduction <add>, %199, %cst_88 [0] : vector<4x128xf32> to vector<128xf32>
    %201 = vector.shape_cast %200 : vector<128xf32> to vector<1x128xf32>
    %202 = tpu.reciprocal %201 {approx = true} : vector<1x128xf32> -> vector<1x128xf32>
    %203 = vector.broadcast %202 : vector<1x128xf32> to vector<4x128xf32>
    %204 = arith.mulf %199, %203 : vector<4x128xf32>
    %205 = arith.truncf %204 : vector<4x128xf32> to vector<4x128xbf16>
    %c7_89 = arith.constant 7 : index
    %c0_90 = arith.constant 0 : index
    %c0_91 = arith.constant 0 : index
    %206 = vector.load %arg8[%c7_89, %c0_90, %c0_91] : memref<8x4x128xbf16, #tpu.memory_space<vmem>>, vector<1x4x128xbf16>
    %207 = vector.shape_cast %206 : vector<1x4x128xbf16> to vector<4x128xbf16>
    %208 = vector.shape_cast %205 : vector<4x128xbf16> to vector<1x4x128xbf16>
    tpu.vector_store %arg8[%c7_89, %c0_90, %c0_91], %208 {strides = array<i32>} : memref<8x4x128xbf16, #tpu.memory_space<vmem>>, vector<1x4x128xbf16>,
    return
  }
  func.func @transform_0(%arg0: i32) -> (i32, i32) {
    %c0_i32 = arith.constant 0 : i32
    %c0_i32_0 = arith.constant 0 : i32
    return %c0_i32, %arg0 : i32, i32
  }
  func.func @transform_1(%arg0: i32) -> (i32, i32, i32) {
    %c0_i32 = arith.constant 0 : i32
    %c0_i32_0 = arith.constant 0 : i32
    %c0_i32_1 = arith.constant 0 : i32
    return %c0_i32, %c0_i32_0, %arg0 : i32, i32, i32
  }
  func.func @transform_2(%arg0: i32) -> (i32, i32) {
    %c0_i32 = arith.constant 0 : i32
    %c0_i32_0 = arith.constant 0 : i32
    %c0_i32_1 = arith.constant 0 : i32
    return %c0_i32, %c0_i32_0 : i32, i32
  }
  func.func @transform_3(%arg0: i32) -> (i32, i32) {
    %c0_i32 = arith.constant 0 : i32
    %c0_i32_0 = arith.constant 0 : i32
    %c0_i32_1 = arith.constant 0 : i32
    return %c0_i32, %c0_i32_0 : i32, i32
  }
  func.func @transform_4(%arg0: i32) -> (i32, i32) {
    %c0_i32 = arith.constant 0 : i32
    %c0_i32_0 = arith.constant 0 : i32
    %c0_i32_1 = arith.constant 0 : i32
    return %c0_i32, %c0_i32_0 : i32, i32
  }
  func.func @transform_5(%arg0: i32) -> (i32, i32) {
    %c0_i32 = arith.constant 0 : i32
    %c0_i32_0 = arith.constant 0 : i32
    %c0_i32_1 = arith.constant 0 : i32
    return %c0_i32, %c0_i32_0 : i32, i32
  }
  func.func @transform_6(%arg0: i32) -> (i32, i32) {
    %c0_i32 = arith.constant 0 : i32
    %c0_i32_0 = arith.constant 0 : i32
    %c0_i32_1 = arith.constant 0 : i32
    return %c0_i32, %c0_i32_0 : i32, i32
  }
  func.func @transform_7(%arg0: i32) -> (i32, i32, i32) {
    %c0_i32 = arith.constant 0 : i32
    %c0_i32_0 = arith.constant 0 : i32
    %c0_i32_1 = arith.constant 0 : i32
    return %c0_i32, %c0_i32_0, %arg0 : i32, i32, i32
  }
}

</mosaic_0001>

<llo_original>
// kernel: tpu_custom_call.1
$region0: #{tpu_custom_call.1}
  #allocation0 [shape = 'u32[]', space=smem, size = 0x4, offset = 0x4, fixed_abs, tag = 'smem constant byte address 0x4 - core index']
  #allocation1 [shape = 'u32[144,128]{1,0:T(1,128)}', space=vmem, size = 0x12000, scoped, tag = 'internal scratch']
  %s0 = inlined_call_operand.vmem [shape: bf16[8,128], index: 0, kind: input, shape index: {}]
  %s1 = inlined_call_operand.vmem [shape: bf16[8,8,128], index: 1, kind: input, shape index: {}]
  %s2 = inlined_call_operand.vmem [shape: bf16[16,8], index: 2, kind: input, shape index: {}]
  %s3 = inlined_call_operand.vmem [shape: bf16[16,8], index: 3, kind: input, shape index: {}]
  %s4 = inlined_call_operand.vmem [shape: f32[16,1], index: 4, kind: input, shape index: {}]
  %s5 = inlined_call_operand.vmem [shape: bf16[4,16], index: 5, kind: input, shape index: {}]
  %s6 = inlined_call_operand.vmem [shape: f32[4,1], index: 6, kind: input, shape index: {}]
  %s7 = inlined_call_operand.hbm [shape: bf16[8,4,128], index: 7, kind: output, shape index: {}]
  %s8 = sld [smem:[#allocation0]]
  $region38: #{tpu_custom_call.1} parent=0
    _
  %s10 = ssub.s32 1, %s8
  %s11 = scalar_select 0, %s10, %s8
  $region1: #{tpu_custom_call.1} parent=0
    #allocation2 [shape = 'u8[8192]{0}', space=vmem, size = 0x2000, scoped, tag = 'output window, operand 0, single buffered']
    #allocation3 [shape = 's32[1]{0}', space=sflag, size = 0x4, scoped, tag = 'scoped memory for tpu_custom_call.1']
    %12 = vsyncpa [#allocation3], 0
    // Predicated region
    $region2: #{tpu_custom_call.1} parent=1 // pred_check
      _
    $region3: #{tpu_custom_call.1} parent=1 // pred_check_branch
      %14 = sbr.rel (0) target = $region5
    $region4: #{tpu_custom_call.1} parent=1 // pred_region
      _
    $region5: #{tpu_custom_call.1} parent=1 // pred_fallthru
      _
    // Predicated region
    $region6: #{tpu_custom_call.1} parent=1 // pred_check
      _
    $region7: #{tpu_custom_call.1} parent=1 // pred_check_branch
      %16 = sbr.rel (0) target = $region9
    $region8: #{tpu_custom_call.1} parent=1 // pred_region
      _
    $region9: #{tpu_custom_call.1} parent=1 // pred_fallthru
      _
    // Predicated region
    $region10: #{tpu_custom_call.1} parent=1 // pred_check
      _
    $region11: #{tpu_custom_call.1} parent=1 // pred_check_branch
      %18 = sbr.rel (0) target = $region13
    $region12: #{tpu_custom_call.1} parent=1 // pred_region
      _
    $region13: #{tpu_custom_call.1} parent=1 // pred_fallthru
      _
    // Predicated region
    $region14: #{tpu_custom_call.1} parent=1 // pred_check
      _
    $region15: #{tpu_custom_call.1} parent=1 // pred_check_branch
      %20 = sbr.rel (0) target = $region17
    $region16: #{tpu_custom_call.1} parent=1 // pred_region
      _
    $region17: #{tpu_custom_call.1} parent=1 // pred_fallthru
      _
    // Predicated region
    $region18: #{tpu_custom_call.1} parent=1 // pred_check
      _
    $region19: #{tpu_custom_call.1} parent=1 // pred_check_branch
      %22 = sbr.rel (0) target = $region21
    $region20: #{tpu_custom_call.1} parent=1 // pred_region
      _
    $region21: #{tpu_custom_call.1} parent=1 // pred_fallthru
      _
    // Predicated region
    $region22: #{tpu_custom_call.1} parent=1 // pred_check
      _
    $region23: #{tpu_custom_call.1} parent=1 // pred_check_branch
      %24 = sbr.rel (0) target = $region25
    $region24: #{tpu_custom_call.1} parent=1 // pred_region
      _
    $region25: #{tpu_custom_call.1} parent=1 // pred_fallthru
      _
    // Predicated region
    $region26: #{tpu_custom_call.1} parent=1 // pred_check
      _
    $region27: #{tpu_custom_call.1} parent=1 // pred_check_branch
      %26 = sbr.rel (0) target = $region29
    $region28: #{tpu_custom_call.1} parent=1 // pred_region
      _
    $region29: #{tpu_custom_call.1} parent=1 // pred_fallthru
      _
    %v28 = vld [vmem:[%s0] sm:$0xf]
    %v29 = vld [vmem:[%s2] sm:$0xf]
    %v30 = vld [vmem:[%s2 + $0x4] sm:$0xf]
    %v31 = vld [vmem:[%s4] sm:$0xff]
    %v32 = vld [vmem:[%s4 + $0x8] sm:$0xff]
    %34 = vset.pattern.permute.xlu0 0
    %35 = vperm.xlu0 %34, %v31
    %v36 = vpop.permute.xlu0 %35
    %39 = vset.pattern.permute.xlu0 0
    %40 = vperm.xlu0 %39, %v32
    %v41 = vpop.permute.xlu0 %40
    %v45 = vunpack.c.l.b16 %v29
    %v46 = vunpack.c.l.b16 %v30
    %v47 = vpack.c.b16 %v46, %v45
    %vm48 = vcmask 64512
    %v50 = vsel %vm48, %v47, 0
    %vm52 = vcmask 1043456
    %v54 = vsel %vm52, %v28, 0
    %56 = vmatprep.subr.bf16.mxu0 0
    %57 = vmatpush1.bf16.msra.mxu0 %v54
    %58 = vmatprep.subr.bf16.mxu0 0
    %59 = vmatpush1.bf16.msra.mxu0 0
    %60 = vmatprep.subr.bf16.mxu0 0
    %61 = vmatpush1.bf16.msra.mxu0 0
    %62 = vmatprep.subr.bf16.mxu0 0
    %63 = vmatpush1.bf16.msra.mxu0 0
    %64 = vmatprep.subr.bf16.mxu0 0
    %65 = vmatpush1.bf16.msra.mxu0 0
    %66 = vmatprep.subr.bf16.mxu0 0
    %67 = vmatpush1.bf16.msra.mxu0 0
    %68 = vmatprep.subr.bf16.mxu0 0
    %69 = vmatpush1.bf16.msra.mxu0 0
    %70 = vmatprep.subr.bf16.mxu0 0
    %71 = vmatpush1.bf16.msra.mxu0 0
    %72 = vmatprep.subr.bf16.mxu0 0
    %73 = vmatpush1.bf16.msra.mxu0 0
    %74 = vmatprep.subr.bf16.mxu0 0
    %75 = vmatpush1.bf16.msra.mxu0 0
    %76 = vmatprep.subr.bf16.mxu0 0
    %77 = vmatpush1.bf16.msra.mxu0 0
    %78 = vmatprep.subr.bf16.mxu0 0
    %79 = vmatpush1.bf16.msra.mxu0 0
    %80 = vmatprep.subr.bf16.mxu0 0
    %81 = vmatpush1.bf16.msra.mxu0 0
    %82 = vmatprep.subr.bf16.mxu0 0
    %83 = vmatpush1.bf16.msra.mxu0 0
    %84 = vmatprep.subr.bf16.mxu0 0
    %85 = vmatpush1.bf16.msra.mxu0 0
    %86 = vmatprep.subr.bf16.mxu0 0
    %87 = vmatpush1.bf16.msra.mxu0 0
    %88 = vmatprep.mubr.bf16.mxu0 0
    %89 = vmatmul.mubr.bf16.gmra.mrb[0].mxu0 %v50
    %v90 = vpop.f32.mrb[0].mxu0
    %v91 = vadd.f32 %v36, %v90
    %v92 = vpop.f32.mrb[0].mxu0
    %v93 = vpop.f32.mrb[0].mxu0
    %v94 = vadd.f32 %v41, %v93
    %v95 = vpop.f32.mrb[0].mxu0
    %96 = vdwg.mxu0
    %v97 = vld [vmem:[%s3] sm:$0xf]
    %v98 = vld [vmem:[%s3 + $0x4] sm:$0xf]
    %v99 = vld [vmem:[%s5] sm:$0x3]
    %v100 = vld [vmem:[%s6] sm:$0xf]
    %v101 = vld [vmem:[%s1] sm:$0xf]
    %v102 = vsub.bf16 %v101, %v28
    %v105 = vunpack.c.l.b16 %v97
    %v106 = vunpack.c.l.b16 %v98
    %v107 = vpack.c.b16 %v106, %v105
    %v109 = vsel %vm48, %v107, 0
    %v112 = vsel %vm52, %v102, 0
    %114 = vmatprep.subr.bf16.mxu0 0
    %115 = vmatpush1.bf16.msra.mxu0 %v112
    %116 = vmatprep.subr.bf16.mxu0 0
    %117 = vmatpush1.bf16.msra.mxu0 0
    %118 = vmatprep.subr.bf16.mxu0 0
    %119 = vmatpush1.bf16.msra.mxu0 0
    %120 = vmatprep.subr.bf16.mxu0 0
    %121 = vmatpush1.bf16.msra.mxu0 0
    %122 = vmatprep.subr.bf16.mxu0 0
    %123 = vmatpush1.bf16.msra.mxu0 0
    %124 = vmatprep.subr.bf16.mxu0 0
    %125 = vmatpush1.bf16.msra.mxu0 0
    %126 = vmatprep.subr.bf16.mxu0 0
    %127 = vmatpush1.bf16.msra.mxu0 0
    %128 = vmatprep.subr.bf16.mxu0 0
    %129 = vmatpush1.bf16.msra.mxu0 0
    %130 = vmatprep.subr.bf16.mxu0 0
    %131 = vmatpush1.bf16.msra.mxu0 0
    %132 = vmatprep.subr.bf16.mxu0 0
    %133 = vmatpush1.bf16.msra.mxu0 0
    %134 = vmatprep.subr.bf16.mxu0 0
    %135 = vmatpush1.bf16.msra.mxu0 0
    %136 = vmatprep.subr.bf16.mxu0 0
    %137 = vmatpush1.bf16.msra.mxu0 0
    %138 = vmatprep.subr.bf16.mxu0 0
    %139 = vmatpush1.bf16.msra.mxu0 0
    %140 = vmatprep.subr.bf16.mxu0 0
    %141 = vmatpush1.bf16.msra.mxu0 0
    %142 = vmatprep.subr.bf16.mxu0 0
    %143 = vmatpush1.bf16.msra.mxu0 0
    %144 = vmatprep.subr.bf16.mxu0 0
    %145 = vmatpush1.bf16.msra.mxu0 0
    %146 = vmatprep.mubr.bf16.mxu0 0
    %147 = vmatmul.mubr.bf16.gmra.mrb[0].mxu0 %v109
    %v148 = vpop.f32.mrb[0].mxu0
    %v149 = vadd.f32 0.0, %v148
    %v150 = vpop.f32.mrb[0].mxu0
    %v151 = vpop.f32.mrb[0].mxu0
    %v152 = vadd.f32 0.0, %v151
    %v153 = vpop.f32.mrb[0].mxu0
    %154 = vdwg.mxu0
    %v155 = vadd.f32 %v91, %v149
    %v156 = vadd.f32 %v94, %v152
    %v157 = vmax.f32 %v155, 0.0
    %v158 = vmax.f32 %v156, 0.0
    %v159 = vpack.c.bf16 %v158, %v157
    %161 = vset.pattern.permute.xlu0 0
    %162 = vperm.xlu0 %161, %v100
    %v163 = vpop.permute.xlu0 %162
    %vm165 = vcmask 130048
    %v167 = vsel %vm165, %v99, 0
    %169 = vmatprep.subr.bf16.mxu0 0
    %170 = vmatpush1.bf16.msra.mxu0 %v159
    %171 = vmatprep.subr.bf16.mxu0 0
    %172 = vmatpush1.bf16.msra.mxu0 0
    %173 = vmatprep.subr.bf16.mxu0 0
    %174 = vmatpush1.bf16.msra.mxu0 0
    %175 = vmatprep.subr.bf16.mxu0 0
    %176 = vmatpush1.bf16.msra.mxu0 0
    %177 = vmatprep.subr.bf16.mxu0 0
    %178 = vmatpush1.bf16.msra.mxu0 0
    %179 = vmatprep.subr.bf16.mxu0 0
    %180 = vmatpush1.bf16.msra.mxu0 0
    %181 = vmatprep.subr.bf16.mxu0 0
    %182 = vmatpush1.bf16.msra.mxu0 0
    %183 = vmatprep.subr.bf16.mxu0 0
    %184 = vmatpush1.bf16.msra.mxu0 0
    %185 = vmatprep.subr.bf16.mxu0 0
    %186 = vmatpush1.bf16.msra.mxu0 0
    %187 = vmatprep.subr.bf16.mxu0 0
    %188 = vmatpush1.bf16.msra.mxu0 0
    %189 = vmatprep.subr.bf16.mxu0 0
    %190 = vmatpush1.bf16.msra.mxu0 0
    %191 = vmatprep.subr.bf16.mxu0 0
    %192 = vmatpush1.bf16.msra.mxu0 0
    %193 = vmatprep.subr.bf16.mxu0 0
    %194 = vmatpush1.bf16.msra.mxu0 0
    %195 = vmatprep.subr.bf16.mxu0 0
    %196 = vmatpush1.bf16.msra.mxu0 0
    %197 = vmatprep.subr.bf16.mxu0 0
    %198 = vmatpush1.bf16.msra.mxu0 0
    %199 = vmatprep.subr.bf16.mxu0 0
    %200 = vmatpush1.bf16.msra.mxu0 0
    %201 = vmatprep.mubr.bf16.mxu0 0
    %202 = vmatmul.mubr.bf16.gmra.mrb[0].mxu0 %v167
    %v203 = vpop.f32.mrb[0].mxu0
    %v204 = vadd.f32 %v163, %v203
    %v205 = vpop.f32.mrb[0].mxu0
    %v206 = vpop.f32.mrb[0].mxu0
    %v207 = vpop.f32.mrb[0].mxu0
    %208 = vdwg.mxu0
    %v209 = vsel %vm52, %v204, -inf
    %v210 = vrot.slane %v209, 4
    %v211 = vmax.f32 %v209, %v210
    %v212 = vrot.slane %v211, 2
    %v213 = vmax.f32 %v211, %v212
    %v214 = vrot.slane %v213, 1
    %v215 = vmax.f32 %v213, %v214
    %v216 = vsub.f32 %v204, %v215
    %v217 = vmul.f32 %v216, 1.442695
    %v218 = vpow.pop %v217
    %v219 = vsel %vm52, %v218, 0.0
    %v220 = vrot.slane %v219, 4
    %v221 = vadd.f32 %v219, %v220
    %v222 = vrot.slane %v221, 2
    %v223 = vadd.f32 %v221, %v222
    %v224 = vrot.slane %v223, 1
    %v225 = vadd.f32 %v223, %v224
    %v226 = vrcp.pop %v225
    %v227 = vmul.f32 %v218, %v226
    %v228 = vpack.c.bf16 %v227, %v227
    %229 = vst [vmem:[#allocation2] sm:$0x3] %v228
    %s230 = scalar_lea.vmem %s1, 4
    %v231 = vld [vmem:[%s230] sm:$0xf]
    %v232 = vsub.bf16 %v231, %v28
    %v234 = vsel %vm52, %v232, 0
    %236 = vmatprep.subr.bf16.mxu0 0
    %237 = vmatpush1.bf16.msra.mxu0 %v234
    %238 = vmatprep.subr.bf16.mxu0 0
    %239 = vmatpush1.bf16.msra.mxu0 0
    %240 = vmatprep.subr.bf16.mxu0 0
    %241 = vmatpush1.bf16.msra.mxu0 0
    %242 = vmatprep.subr.bf16.mxu0 0
    %243 = vmatpush1.bf16.msra.mxu0 0
    %244 = vmatprep.subr.bf16.mxu0 0
    %245 = vmatpush1.bf16.msra.mxu0 0
    %246 = vmatprep.subr.bf16.mxu0 0
    %247 = vmatpush1.bf16.msra.mxu0 0
    %248 = vmatprep.subr.bf16.mxu0 0
    %249 = vmatpush1.bf16.msra.mxu0 0
    %250 = vmatprep.subr.bf16.mxu0 0
    %251 = vmatpush1.bf16.msra.mxu0 0
    %252 = vmatprep.subr.bf16.mxu0 0
    %253 = vmatpush1.bf16.msra.mxu0 0
    %254 = vmatprep.subr.bf16.mxu0 0
    %255 = vmatpush1.bf16.msra.mxu0 0
    %256 = vmatprep.subr.bf16.mxu0 0
    %257 = vmatpush1.bf16.msra.mxu0 0
    %258 = vmatprep.subr.bf16.mxu0 0
    %259 = vmatpush1.bf16.msra.mxu0 0
    %260 = vmatprep.subr.bf16.mxu0 0
    %261 = vmatpush1.bf16.msra.mxu0 0
    %262 = vmatprep.subr.bf16.mxu0 0
    %263 = vmatpush1.bf16.msra.mxu0 0
    %264 = vmatprep.subr.bf16.mxu0 0
    %265 = vmatpush1.bf16.msra.mxu0 0
    %266 = vmatprep.subr.bf16.mxu0 0
    %267 = vmatpush1.bf16.msra.mxu0 0
    %268 = vmatprep.mubr.bf16.mxu0 0
    %269 = vmatmul.mubr.bf16.gmra.mrb[0].mxu0 %v109
    %v270 = vpop.f32.mrb[0].mxu0
    %v271 = vadd.f32 0.0, %v270
    %v272 = vpop.f32.mrb[0].mxu0
    %v273 = vpop.f32.mrb[0].mxu0
    %v274 = vadd.f32 0.0, %v273
    %v275 = vpop.f32.mrb[0].mxu0
    %276 = vdwg.mxu0
    %v277 = vadd.f32 %v91, %v271
    %v278 = vadd.f32 %v94, %v274
    %v279 = vmax.f32 %v277, 0.0
    %v280 = vmax.f32 %v278, 0.0
    %v281 = vpack.c.bf16 %v280, %v279
    %282 = vmatprep.subr.bf16.mxu0 0
    %283 = vmatpush1.bf16.msra.mxu0 %v281
    %284 = vmatprep.subr.bf16.mxu0 0
    %285 = vmatpush1.bf16.msra.mxu0 0
    %286 = vmatprep.subr.bf16.mxu0 0
    %287 = vmatpush1.bf16.msra.mxu0 0
    %288 = vmatprep.subr.bf16.mxu0 0
    %289 = vmatpush1.bf16.msra.mxu0 0
    %290 = vmatprep.subr.bf16.mxu0 0
    %291 = vmatpush1.bf16.msra.mxu0 0
    %292 = vmatprep.subr.bf16.mxu0 0
    %293 = vmatpush1.bf16.msra.mxu0 0
    %294 = vmatprep.subr.bf16.mxu0 0
    %295 = vmatpush1.bf16.msra.mxu0 0
    %296 = vmatprep.subr.bf16.mxu0 0
    %297 = vmatpush1.bf16.msra.mxu0 0
    %298 = vmatprep.subr.bf16.mxu0 0
    %299 = vmatpush1.bf16.msra.mxu0 0
    %300 = vmatprep.subr.bf16.mxu0 0
    %301 = vmatpush1.bf16.msra.mxu0 0
    %302 = vmatprep.subr.bf16.mxu0 0
    %303 = vmatpush1.bf16.msra.mxu0 0
    %304 = vmatprep.subr.bf16.mxu0 0
    %305 = vmatpush1.bf16.msra.mxu0 0
    %306 = vmatprep.subr.bf16.mxu0 0
    %307 = vmatpush1.bf16.msra.mxu0 0
    %308 = vmatprep.subr.bf16.mxu0 0
    %309 = vmatpush1.bf16.msra.mxu0 0
    %310 = vmatprep.subr.bf16.mxu0 0
    %311 = vmatpush1.bf16.msra.mxu0 0
    %312 = vmatprep.subr.bf16.mxu0 0
    %313 = vmatpush1.bf16.msra.mxu0 0
    %314 = vmatprep.mubr.bf16.mxu0 0
    %315 = vmatmul.mubr.bf16.gmra.mrb[0].mxu0 %v167
    %v316 = vpop.f32.mrb[0].mxu0
    %v317 = vadd.f32 %v163, %v316
    %v318 = vpop.f32.mrb[0].mxu0
    %v319 = vpop.f32.mrb[0].mxu0
    %v320 = vpop.f32.mrb[0].mxu0
    %321 = vdwg.mxu0
    %v322 = vsel %vm52, %v317, -inf
    %v323 = vrot.slane %v322, 4
    %v324 = vmax.f32 %v322, %v323
    %v325 = vrot.slane %v324, 2
    %v326 = vmax.f32 %v324, %v325
    %v327 = vrot.slane %v326, 1
    %v328 = vmax.f32 %v326, %v327
    %v329 = vsub.f32 %v317, %v328
    %v330 = vmul.f32 %v329, 1.442695
    %v331 = vpow.pop %v330
    %v332 = vsel %vm52, %v331, 0.0
    %v333 = vrot.slane %v332, 4
    %v334 = vadd.f32 %v332, %v333
    %v335 = vrot.slane %v334, 2
    %v336 = vadd.f32 %v334, %v335
    %v337 = vrot.slane %v336, 1
    %v338 = vadd.f32 %v336, %v337
    %v339 = vrcp.pop %v338
    %v340 = vmul.f32 %v331, %v339
    %v341 = vpack.c.bf16 %v340, %v340
    %s342 = scalar_lea.vmem [#allocation2], 2
    %343 = vst [vmem:[%s342] sm:$0x3] %v341
    %s344 = scalar_lea.vmem %s1, 8
    %v345 = vld [vmem:[%s344] sm:$0xf]
    %v346 = vsub.bf16 %v345, %v28
    %v348 = vsel %vm52, %v346, 0
    %350 = vmatprep.subr.bf16.mxu0 0
    %351 = vmatpush1.bf16.msra.mxu0 %v348
    %352 = vmatprep.subr.bf16.mxu0 0
    %353 = vmatpush1.bf16.msra.mxu0 0
    %354 = vmatprep.subr.bf16.mxu0 0
    %355 = vmatpush1.bf16.msra.mxu0 0
    %356 = vmatprep.subr.bf16.mxu0 0
    %357 = vmatpush1.bf16.msra.mxu0 0
    %358 = vmatprep.subr.bf16.mxu0 0
    %359 = vmatpush1.bf16.msra.mxu0 0
    %360 = vmatprep.subr.bf16.mxu0 0
    %361 = vmatpush1.bf16.msra.mxu0 0
    %362 = vmatprep.subr.bf16.mxu0 0
    %363 = vmatpush1.bf16.msra.mxu0 0
    %364 = vmatprep.subr.bf16.mxu0 0
    %365 = vmatpush1.bf16.msra.mxu0 0
    %366 = vmatprep.subr.bf16.mxu0 0
    %367 = vmatpush1.bf16.msra.mxu0 0
    %368 = vmatprep.subr.bf16.mxu0 0
    %369 = vmatpush1.bf16.msra.mxu0 0
    %370 = vmatprep.subr.bf16.mxu0 0
    %371 = vmatpush1.bf16.msra.mxu0 0
    %372 = vmatprep.subr.bf16.mxu0 0
    %373 = vmatpush1.bf16.msra.mxu0 0
    %374 = vmatprep.subr.bf16.mxu0 0
    %375 = vmatpush1.bf16.msra.mxu0 0
    %376 = vmatprep.subr.bf16.mxu0 0
    %377 = vmatpush1.bf16.msra.mxu0 0
    %378 = vmatprep.subr.bf16.mxu0 0
    %379 = vmatpush1.bf16.msra.mxu0 0
    %380 = vmatprep.subr.bf16.mxu0 0
    %381 = vmatpush1.bf16.msra.mxu0 0
    %382 = vmatprep.mubr.bf16.mxu0 0
    %383 = vmatmul.mubr.bf16.gmra.mrb[0].mxu0 %v109
    %v384 = vpop.f32.mrb[0].mxu0
    %v385 = vadd.f32 0.0, %v384
    %v386 = vpop.f32.mrb[0].mxu0
    %v387 = vpop.f32.mrb[0].mxu0
    %v388 = vadd.f32 0.0, %v387
    %v389 = vpop.f32.mrb[0].mxu0
    %390 = vdwg.mxu0
    %v391 = vadd.f32 %v91, %v385
    %v392 = vadd.f32 %v94, %v388
    %v393 = vmax.f32 %v391, 0.0
    %v394 = vmax.f32 %v392, 0.0
    %v395 = vpack.c.bf16 %v394, %v393
    %396 = vmatprep.subr.bf16.mxu0 0
    %397 = vmatpush1.bf16.msra.mxu0 %v395
    %398 = vmatprep.subr.bf16.mxu0 0
    %399 = vmatpush1.bf16.msra.mxu0 0
    %400 = vmatprep.subr.bf16.mxu0 0
    %401 = vmatpush1.bf16.msra.mxu0 0
    %402 = vmatprep.subr.bf16.mxu0 0
    %403 = vmatpush1.bf16.msra.mxu0 0
    %404 = vmatprep.subr.bf16.mxu0 0
    %405 = vmatpush1.bf16.msra.mxu0 0
    %406 = vmatprep.subr.bf16.mxu0 0
    %407 = vmatpush1.bf16.msra.mxu0 0
    %408 = vmatprep.subr.bf16.mxu0 0
    %409 = vmatpush1.bf16.msra.mxu0 0
    %410 = vmatprep.subr.bf16.mxu0 0
    %411 = vmatpush1.bf16.msra.mxu0 0
    %412 = vmatprep.subr.bf16.mxu0 0
    %413 = vmatpush1.bf16.msra.mxu0 0
    %414 = vmatprep.subr.bf16.mxu0 0
    %415 = vmatpush1.bf16.msra.mxu0 0
    %416 = vmatprep.subr.bf16.mxu0 0
    %417 = vmatpush1.bf16.msra.mxu0 0
    %418 = vmatprep.subr.bf16.mxu0 0
    %419 = vmatpush1.bf16.msra.mxu0 0
    %420 = vmatprep.subr.bf16.mxu0 0
    %421 = vmatpush1.bf16.msra.mxu0 0
    %422 = vmatprep.subr.bf16.mxu0 0
    %423 = vmatpush1.bf16.msra.mxu0 0
    %424 = vmatprep.subr.bf16.mxu0 0
    %425 = vmatpush1.bf16.msra.mxu0 0
    %426 = vmatprep.subr.bf16.mxu0 0
    %427 = vmatpush1.bf16.msra.mxu0 0
    %428 = vmatprep.mubr.bf16.mxu0 0
    %429 = vmatmul.mubr.bf16.gmra.mrb[0].mxu0 %v167
    %v430 = vpop.f32.mrb[0].mxu0
    %v431 = vadd.f32 %v163, %v430
    %v432 = vpop.f32.mrb[0].mxu0
    %v433 = vpop.f32.mrb[0].mxu0
    %v434 = vpop.f32.mrb[0].mxu0
    %435 = vdwg.mxu0
    %v436 = vsel %vm52, %v431, -inf
    %v437 = vrot.slane %v436, 4
    %v438 = vmax.f32 %v436, %v437
    %v439 = vrot.slane %v438, 2
    %v440 = vmax.f32 %v438, %v439
    %v441 = vrot.slane %v440, 1
    %v442 = vmax.f32 %v440, %v441
    %v443 = vsub.f32 %v431, %v442
    %v444 = vmul.f32 %v443, 1.442695
    %v445 = vpow.pop %v444
    %v446 = vsel %vm52, %v445, 0.0
    %v447 = vrot.slane %v446, 4
    %v448 = vadd.f32 %v446, %v447
    %v449 = vrot.slane %v448, 2
    %v450 = vadd.f32 %v448, %v449
    %v451 = vrot.slane %v450, 1
    %v452 = vadd.f32 %v450, %v451
    %v453 = vrcp.pop %v452
    %v454 = vmul.f32 %v445, %v453
    %v455 = vpack.c.bf16 %v454, %v454
    %s456 = scalar_lea.vmem [#allocation2], 4
    %457 = vst [vmem:[%s456] sm:$0x3] %v455
    %s458 = scalar_lea.vmem %s1, 12
    %v459 = vld [vmem:[%s458] sm:$0xf]
    %v460 = vsub.bf16 %v459, %v28
    %v462 = vsel %vm52, %v460, 0
    %464 = vmatprep.subr.bf16.mxu0 0
    %465 = vmatpush1.bf16.msra.mxu0 %v462
    %466 = vmatprep.subr.bf16.mxu0 0
    %467 = vmatpush1.bf16.msra.mxu0 0
    %468 = vmatprep.subr.bf16.mxu0 0
    %469 = vmatpush1.bf16.msra.mxu0 0
    %470 = vmatprep.subr.bf16.mxu0 0
    %471 = vmatpush1.bf16.msra.mxu0 0
    %472 = vmatprep.subr.bf16.mxu0 0
    %473 = vmatpush1.bf16.msra.mxu0 0
    %474 = vmatprep.subr.bf16.mxu0 0
    %475 = vmatpush1.bf16.msra.mxu0 0
    %476 = vmatprep.subr.bf16.mxu0 0
    %477 = vmatpush1.bf16.msra.mxu0 0
    %478 = vmatprep.subr.bf16.mxu0 0
    %479 = vmatpush1.bf16.msra.mxu0 0
    %480 = vmatprep.subr.bf16.mxu0 0
    %481 = vmatpush1.bf16.msra.mxu0 0
    %482 = vmatprep.subr.bf16.mxu0 0
    %483 = vmatpush1.bf16.msra.mxu0 0
    %484 = vmatprep.subr.bf16.mxu0 0
    %485 = vmatpush1.bf16.msra.mxu0 0
    %486 = vmatprep.subr.bf16.mxu0 0
    %487 = vmatpush1.bf16.msra.mxu0 0
    %488 = vmatprep.subr.bf16.mxu0 0
    %489 = vmatpush1.bf16.msra.mxu0 0
    %490 = vmatprep.subr.bf16.mxu0 0
    %491 = vmatpush1.bf16.msra.mxu0 0
    %492 = vmatprep.subr.bf16.mxu0 0
    %493 = vmatpush1.bf16.msra.mxu0 0
    %494 = vmatprep.subr.bf16.mxu0 0
    %495 = vmatpush1.bf16.msra.mxu0 0
    %496 = vmatprep.mubr.bf16.mxu0 0
    %497 = vmatmul.mubr.bf16.gmra.mrb[0].mxu0 %v109
    %v498 = vpop.f32.mrb[0].mxu0
    %v499 = vadd.f32 0.0, %v498
    %v500 = vpop.f32.mrb[0].mxu0
    %v501 = vpop.f32.mrb[0].mxu0
    %v502 = vadd.f32 0.0, %v501
    %v503 = vpop.f32.mrb[0].mxu0
    %504 = vdwg.mxu0
    %v505 = vadd.f32 %v91, %v499
    %v506 = vadd.f32 %v94, %v502
    %v507 = vmax.f32 %v505, 0.0
    %v508 = vmax.f32 %v506, 0.0
    %v509 = vpack.c.bf16 %v508, %v507
    %510 = vmatprep.subr.bf16.mxu0 0
    %511 = vmatpush1.bf16.msra.mxu0 %v509
    %512 = vmatprep.subr.bf16.mxu0 0
    %513 = vmatpush1.bf16.msra.mxu0 0
    %514 = vmatprep.subr.bf16.mxu0 0
    %515 = vmatpush1.bf16.msra.mxu0 0
    %516 = vmatprep.subr.bf16.mxu0 0
    %517 = vmatpush1.bf16.msra.mxu0 0
    %518 = vmatprep.subr.bf16.mxu0 0
    %519 = vmatpush1.bf16.msra.mxu0 0
    %520 = vmatprep.subr.bf16.mxu0 0
    %521 = vmatpush1.bf16.msra.mxu0 0
    %522 = vmatprep.subr.bf16.mxu0 0
    %523 = vmatpush1.bf16.msra.mxu0 0
    %524 = vmatprep.subr.bf16.mxu0 0
    %525 = vmatpush1.bf16.msra.mxu0 0
    %526 = vmatprep.subr.bf16.mxu0 0
    %527 = vmatpush1.bf16.msra.mxu0 0
    %528 = vmatprep.subr.bf16.mxu0 0
    %529 = vmatpush1.bf16.msra.mxu0 0
    %530 = vmatprep.subr.bf16.mxu0 0
    %531 = vmatpush1.bf16.msra.mxu0 0
    %532 = vmatprep.subr.bf16.mxu0 0
    %533 = vmatpush1.bf16.msra.mxu0 0
    %534 = vmatprep.subr.bf16.mxu0 0
    %535 = vmatpush1.bf16.msra.mxu0 0
    %536 = vmatprep.subr.bf16.mxu0 0
    %537 = vmatpush1.bf16.msra.mxu0 0
    %538 = vmatprep.subr.bf16.mxu0 0
    %539 = vmatpush1.bf16.msra.mxu0 0
    %540 = vmatprep.subr.bf16.mxu0 0
    %541 = vmatpush1.bf16.msra.mxu0 0
    %542 = vmatprep.mubr.bf16.mxu0 0
    %543 = vmatmul.mubr.bf16.gmra.mrb[0].mxu0 %v167
    %v544 = vpop.f32.mrb[0].mxu0
    %v545 = vadd.f32 %v163, %v544
    %v546 = vpop.f32.mrb[0].mxu0
    %v547 = vpop.f32.mrb[0].mxu0
    %v548 = vpop.f32.mrb[0].mxu0
    %549 = vdwg.mxu0
    %v550 = vsel %vm52, %v545, -inf
    %v551 = vrot.slane %v550, 4
    %v552 = vmax.f32 %v550, %v551
    %v553 = vrot.slane %v552, 2
    %v554 = vmax.f32 %v552, %v553
    %v555 = vrot.slane %v554, 1
    %v556 = vmax.f32 %v554, %v555
    %v557 = vsub.f32 %v545, %v556
    %v558 = vmul.f32 %v557, 1.442695
    %v559 = vpow.pop %v558
    %v560 = vsel %vm52, %v559, 0.0
    %v561 = vrot.slane %v560, 4
    %v562 = vadd.f32 %v560, %v561
    %v563 = vrot.slane %v562, 2
    %v564 = vadd.f32 %v562, %v563
    %v565 = vrot.slane %v564, 1
    %v566 = vadd.f32 %v564, %v565
    %v567 = vrcp.pop %v566
    %v568 = vmul.f32 %v559, %v567
    %v569 = vpack.c.bf16 %v568, %v568
    %s570 = scalar_lea.vmem [#allocation2], 6
    %571 = vst [vmem:[%s570] sm:$0x3] %v569
    %s572 = scalar_lea.vmem %s1, 16
    %v573 = vld [vmem:[%s572] sm:$0xf]
    %v574 = vsub.bf16 %v573, %v28
    %v576 = vsel %vm52, %v574, 0
    %578 = vmatprep.subr.bf16.mxu0 0
    %579 = vmatpush1.bf16.msra.mxu0 %v576
    %580 = vmatprep.subr.bf16.mxu0 0
    %581 = vmatpush1.bf16.msra.mxu0 0
    %582 = vmatprep.subr.bf16.mxu0 0
    %583 = vmatpush1.bf16.msra.mxu0 0
    %584 = vmatprep.subr.bf16.mxu0 0
    %585 = vmatpush1.bf16.msra.mxu0 0
    %586 = vmatprep.subr.bf16.mxu0 0
    %587 = vmatpush1.bf16.msra.mxu0 0
    %588 = vmatprep.subr.bf16.mxu0 0
    %589 = vmatpush1.bf16.msra.mxu0 0
    %590 = vmatprep.subr.bf16.mxu0 0
    %591 = vmatpush1.bf16.msra.mxu0 0
    %592 = vmatprep.subr.bf16.mxu0 0
    %593 = vmatpush1.bf16.msra.mxu0 0
    %594 = vmatprep.subr.bf16.mxu0 0
    %595 = vmatpush1.bf16.msra.mxu0 0
    %596 = vmatprep.subr.bf16.mxu0 0
    %597 = vmatpush1.bf16.msra.mxu0 0
    %598 = vmatprep.subr.bf16.mxu0 0
    %599 = vmatpush1.bf16.msra.mxu0 0
    %600 = vmatprep.subr.bf16.mxu0 0
    %601 = vmatpush1.bf16.msra.mxu0 0
    %602 = vmatprep.subr.bf16.mxu0 0
    %603 = vmatpush1.bf16.msra.mxu0 0
    %604 = vmatprep.subr.bf16.mxu0 0
    %605 = vmatpush1.bf16.msra.mxu0 0
    %606 = vmatprep.subr.bf16.mxu0 0
    %607 = vmatpush1.bf16.msra.mxu0 0
    %608 = vmatprep.subr.bf16.mxu0 0
    %609 = vmatpush1.bf16.msra.mxu0 0
    %610 = vmatprep.mubr.bf16.mxu0 0
    %611 = vmatmul.mubr.bf16.gmra.mrb[0].mxu0 %v109
    %v612 = vpop.f32.mrb[0].mxu0
    %v613 = vadd.f32 0.0, %v612
    %v614 = vpop.f32.mrb[0].mxu0
    %v615 = vpop.f32.mrb[0].mxu0
    %v616 = vadd.f32 0.0, %v615
    %v617 = vpop.f32.mrb[0].mxu0
    %618 = vdwg.mxu0
    %v619 = vadd.f32 %v91, %v613
    %v620 = vadd.f32 %v94, %v616
    %v621 = vmax.f32 %v619, 0.0
    %v622 = vmax.f32 %v620, 0.0
    %v623 = vpack.c.bf16 %v622, %v621
    %624 = vmatprep.subr.bf16.mxu0 0
    %625 = vmatpush1.bf16.msra.mxu0 %v623
    %626 = vmatprep.subr.bf16.mxu0 0
    %627 = vmatpush1.bf16.msra.mxu0 0
    %628 = vmatprep.subr.bf16.mxu0 0
    %629 = vmatpush1.bf16.msra.mxu0 0
    %630 = vmatprep.subr.bf16.mxu0 0
    %631 = vmatpush1.bf16.msra.mxu0 0
    %632 = vmatprep.subr.bf16.mxu0 0
    %633 = vmatpush1.bf16.msra.mxu0 0
    %634 = vmatprep.subr.bf16.mxu0 0
    %635 = vmatpush1.bf16.msra.mxu0 0
    %636 = vmatprep.subr.bf16.mxu0 0
    %637 = vmatpush1.bf16.msra.mxu0 0
    %638 = vmatprep.subr.bf16.mxu0 0
    %639 = vmatpush1.bf16.msra.mxu0 0
    %640 = vmatprep.subr.bf16.mxu0 0
    %641 = vmatpush1.bf16.msra.mxu0 0
    %642 = vmatprep.subr.bf16.mxu0 0
    %643 = vmatpush1.bf16.msra.mxu0 0
    %644 = vmatprep.subr.bf16.mxu0 0
    %645 = vmatpush1.bf16.msra.mxu0 0
    %646 = vmatprep.subr.bf16.mxu0 0
    %647 = vmatpush1.bf16.msra.mxu0 0
    %648 = vmatprep.subr.bf16.mxu0 0
    %649 = vmatpush1.bf16.msra.mxu0 0
    %650 = vmatprep.subr.bf16.mxu0 0
    %651 = vmatpush1.bf16.msra.mxu0 0
    %652 = vmatprep.subr.bf16.mxu0 0
    %653 = vmatpush1.bf16.msra.mxu0 0
    %654 = vmatprep.subr.bf16.mxu0 0
    %655 = vmatpush1.bf16.msra.mxu0 0
    %656 = vmatprep.mubr.bf16.mxu0 0
    %657 = vmatmul.mubr.bf16.gmra.mrb[0].mxu0 %v167
    %v658 = vpop.f32.mrb[0].mxu0
    %v659 = vadd.f32 %v163, %v658
    %v660 = vpop.f32.mrb[0].mxu0
    %v661 = vpop.f32.mrb[0].mxu0
    %v662 = vpop.f32.mrb[0].mxu0
    %663 = vdwg.mxu0
    %v664 = vsel %vm52, %v659, -inf
    %v665 = vrot.slane %v664, 4
    %v666 = vmax.f32 %v664, %v665
    %v667 = vrot.slane %v666, 2
    %v668 = vmax.f32 %v666, %v667
    %v669 = vrot.slane %v668, 1
    %v670 = vmax.f32 %v668, %v669
    %v671 = vsub.f32 %v659, %v670
    %v672 = vmul.f32 %v671, 1.442695
    %v673 = vpow.pop %v672
    %v674 = vsel %vm52, %v673, 0.0
    %v675 = vrot.slane %v674, 4
    %v676 = vadd.f32 %v674, %v675
    %v677 = vrot.slane %v676, 2
    %v678 = vadd.f32 %v676, %v677
    %v679 = vrot.slane %v678, 1
    %v680 = vadd.f32 %v678, %v679
    %v681 = vrcp.pop %v680
    %v682 = vmul.f32 %v673, %v681
    %v683 = vpack.c.bf16 %v682, %v682
    %s684 = scalar_lea.vmem [#allocation2], 8
    %685 = vst [vmem:[%s684] sm:$0x3] %v683
    %s686 = scalar_lea.vmem %s1, 20
    %v687 = vld [vmem:[%s686] sm:$0xf]
    %v688 = vsub.bf16 %v687, %v28
    %v690 = vsel %vm52, %v688, 0
    %692 = vmatprep.subr.bf16.mxu0 0
    %693 = vmatpush1.bf16.msra.mxu0 %v690
    %694 = vmatprep.subr.bf16.mxu0 0
    %695 = vmatpush1.bf16.msra.mxu0 0
    %696 = vmatprep.subr.bf16.mxu0 0
    %697 = vmatpush1.bf16.msra.mxu0 0
    %698 = vmatprep.subr.bf16.mxu0 0
    %699 = vmatpush1.bf16.msra.mxu0 0
    %700 = vmatprep.subr.bf16.mxu0 0
    %701 = vmatpush1.bf16.msra.mxu0 0
    %702 = vmatprep.subr.bf16.mxu0 0
    %703 = vmatpush1.bf16.msra.mxu0 0
    %704 = vmatprep.subr.bf16.mxu0 0
    %705 = vmatpush1.bf16.msra.mxu0 0
    %706 = vmatprep.subr.bf16.mxu0 0
    %707 = vmatpush1.bf16.msra.mxu0 0
    %708 = vmatprep.subr.bf16.mxu0 0
    %709 = vmatpush1.bf16.msra.mxu0 0
    %710 = vmatprep.subr.bf16.mxu0 0
    %711 = vmatpush1.bf16.msra.mxu0 0
    %712 = vmatprep.subr.bf16.mxu0 0
    %713 = vmatpush1.bf16.msra.mxu0 0
    %714 = vmatprep.subr.bf16.mxu0 0
    %715 = vmatpush1.bf16.msra.mxu0 0
    %716 = vmatprep.subr.bf16.mxu0 0
    %717 = vmatpush1.bf16.msra.mxu0 0
    %718 = vmatprep.subr.bf16.mxu0 0
    %719 = vmatpush1.bf16.msra.mxu0 0
    %720 = vmatprep.subr.bf16.mxu0 0
    %721 = vmatpush1.bf16.msra.mxu0 0
    %722 = vmatprep.subr.bf16.mxu0 0
    %723 = vmatpush1.bf16.msra.mxu0 0
    %724 = vmatprep.mubr.bf16.mxu0 0
    %725 = vmatmul.mubr.bf16.gmra.mrb[0].mxu0 %v109
    %v726 = vpop.f32.mrb[0].mxu0
    %v727 = vadd.f32 0.0, %v726
    %v728 = vpop.f32.mrb[0].mxu0
    %v729 = vpop.f32.mrb[0].mxu0
    %v730 = vadd.f32 0.0, %v729
    %v731 = vpop.f32.mrb[0].mxu0
    %732 = vdwg.mxu0
    %v733 = vadd.f32 %v91, %v727
    %v734 = vadd.f32 %v94, %v730
    %v735 = vmax.f32 %v733, 0.0
    %v736 = vmax.f32 %v734, 0.0
    %v737 = vpack.c.bf16 %v736, %v735
    %738 = vmatprep.subr.bf16.mxu0 0
    %739 = vmatpush1.bf16.msra.mxu0 %v737
    %740 = vmatprep.subr.bf16.mxu0 0
    %741 = vmatpush1.bf16.msra.mxu0 0
    %742 = vmatprep.subr.bf16.mxu0 0
    %743 = vmatpush1.bf16.msra.mxu0 0
    %744 = vmatprep.subr.bf16.mxu0 0
    %745 = vmatpush1.bf16.msra.mxu0 0
    %746 = vmatprep.subr.bf16.mxu0 0
    %747 = vmatpush1.bf16.msra.mxu0 0
    %748 = vmatprep.subr.bf16.mxu0 0
    %749 = vmatpush1.bf16.msra.mxu0 0
    %750 = vmatprep.subr.bf16.mxu0 0
    %751 = vmatpush1.bf16.msra.mxu0 0
    %752 = vmatprep.subr.bf16.mxu0 0
    %753 = vmatpush1.bf16.msra.mxu0 0
    %754 = vmatprep.subr.bf16.mxu0 0
    %755 = vmatpush1.bf16.msra.mxu0 0
    %756 = vmatprep.subr.bf16.mxu0 0
    %757 = vmatpush1.bf16.msra.mxu0 0
    %758 = vmatprep.subr.bf16.mxu0 0
    %759 = vmatpush1.bf16.msra.mxu0 0
    %760 = vmatprep.subr.bf16.mxu0 0
    %761 = vmatpush1.bf16.msra.mxu0 0
    %762 = vmatprep.subr.bf16.mxu0 0
    %763 = vmatpush1.bf16.msra.mxu0 0
    %764 = vmatprep.subr.bf16.mxu0 0
    %765 = vmatpush1.bf16.msra.mxu0 0
    %766 = vmatprep.subr.bf16.mxu0 0
    %767 = vmatpush1.bf16.msra.mxu0 0
    %768 = vmatprep.subr.bf16.mxu0 0
    %769 = vmatpush1.bf16.msra.mxu0 0
    %770 = vmatprep.mubr.bf16.mxu0 0
    %771 = vmatmul.mubr.bf16.gmra.mrb[0].mxu0 %v167
    %v772 = vpop.f32.mrb[0].mxu0
    %v773 = vadd.f32 %v163, %v772
    %v774 = vpop.f32.mrb[0].mxu0
    %v775 = vpop.f32.mrb[0].mxu0
    %v776 = vpop.f32.mrb[0].mxu0
    %777 = vdwg.mxu0
    %v778 = vsel %vm52, %v773, -inf
    %v779 = vrot.slane %v778, 4
    %v780 = vmax.f32 %v778, %v779
    %v781 = vrot.slane %v780, 2
    %v782 = vmax.f32 %v780, %v781
    %v783 = vrot.slane %v782, 1
    %v784 = vmax.f32 %v782, %v783
    %v785 = vsub.f32 %v773, %v784
    %v786 = vmul.f32 %v785, 1.442695
    %v787 = vpow.pop %v786
    %v788 = vsel %vm52, %v787, 0.0
    %v789 = vrot.slane %v788, 4
    %v790 = vadd.f32 %v788, %v789
    %v791 = vrot.slane %v790, 2
    %v792 = vadd.f32 %v790, %v791
    %v793 = vrot.slane %v792, 1
    %v794 = vadd.f32 %v792, %v793
    %v795 = vrcp.pop %v794
    %v796 = vmul.f32 %v787, %v795
    %v797 = vpack.c.bf16 %v796, %v796
    %s798 = scalar_lea.vmem [#allocation2], 10
    %799 = vst [vmem:[%s798] sm:$0x3] %v797
    %s800 = scalar_lea.vmem %s1, 24
    %v801 = vld [vmem:[%s800] sm:$0xf]
    %v802 = vsub.bf16 %v801, %v28
    %v804 = vsel %vm52, %v802, 0
    %806 = vmatprep.subr.bf16.mxu0 0
    %807 = vmatpush1.bf16.msra.mxu0 %v804
    %808 = vmatprep.subr.bf16.mxu0 0
    %809 = vmatpush1.bf16.msra.mxu0 0
    %810 = vmatprep.subr.bf16.mxu0 0
    %811 = vmatpush1.bf16.msra.mxu0 0
    %812 = vmatprep.subr.bf16.mxu0 0
    %813 = vmatpush1.bf16.msra.mxu0 0
    %814 = vmatprep.subr.bf16.mxu0 0
    %815 = vmatpush1.bf16.msra.mxu0 0
    %816 = vmatprep.subr.bf16.mxu0 0
    %817 = vmatpush1.bf16.msra.mxu0 0
    %818 = vmatprep.subr.bf16.mxu0 0
    %819 = vmatpush1.bf16.msra.mxu0 0
    %820 = vmatprep.subr.bf16.mxu0 0
    %821 = vmatpush1.bf16.msra.mxu0 0
    %822 = vmatprep.subr.bf16.mxu0 0
    %823 = vmatpush1.bf16.msra.mxu0 0
    %824 = vmatprep.subr.bf16.mxu0 0
    %825 = vmatpush1.bf16.msra.mxu0 0
    %826 = vmatprep.subr.bf16.mxu0 0
    %827 = vmatpush1.bf16.msra.mxu0 0
    %828 = vmatprep.subr.bf16.mxu0 0
    %829 = vmatpush1.bf16.msra.mxu0 0
    %830 = vmatprep.subr.bf16.mxu0 0
    %831 = vmatpush1.bf16.msra.mxu0 0
    %832 = vmatprep.subr.bf16.mxu0 0
    %833 = vmatpush1.bf16.msra.mxu0 0
    %834 = vmatprep.subr.bf16.mxu0 0
    %835 = vmatpush1.bf16.msra.mxu0 0
    %836 = vmatprep.subr.bf16.mxu0 0
    %837 = vmatpush1.bf16.msra.mxu0 0
    %838 = vmatprep.mubr.bf16.mxu0 0
    %839 = vmatmul.mubr.bf16.gmra.mrb[0].mxu0 %v109
    %v840 = vpop.f32.mrb[0].mxu0
    %v841 = vadd.f32 0.0, %v840
    %v842 = vpop.f32.mrb[0].mxu0
    %v843 = vpop.f32.mrb[0].mxu0
    %v844 = vadd.f32 0.0, %v843
    %v845 = vpop.f32.mrb[0].mxu0
    %846 = vdwg.mxu0
    %v847 = vadd.f32 %v91, %v841
    %v848 = vadd.f32 %v94, %v844
    %v849 = vmax.f32 %v847, 0.0
    %v850 = vmax.f32 %v848, 0.0
    %v851 = vpack.c.bf16 %v850, %v849
    %852 = vmatprep.subr.bf16.mxu0 0
    %853 = vmatpush1.bf16.msra.mxu0 %v851
    %854 = vmatprep.subr.bf16.mxu0 0
    %855 = vmatpush1.bf16.msra.mxu0 0
    %856 = vmatprep.subr.bf16.mxu0 0
    %857 = vmatpush1.bf16.msra.mxu0 0
    %858 = vmatprep.subr.bf16.mxu0 0
    %859 = vmatpush1.bf16.msra.mxu0 0
    %860 = vmatprep.subr.bf16.mxu0 0
    %861 = vmatpush1.bf16.msra.mxu0 0
    %862 = vmatprep.subr.bf16.mxu0 0
    %863 = vmatpush1.bf16.msra.mxu0 0
    %864 = vmatprep.subr.bf16.mxu0 0
    %865 = vmatpush1.bf16.msra.mxu0 0
    %866 = vmatprep.subr.bf16.mxu0 0
    %867 = vmatpush1.bf16.msra.mxu0 0
    %868 = vmatprep.subr.bf16.mxu0 0
    %869 = vmatpush1.bf16.msra.mxu0 0
    %870 = vmatprep.subr.bf16.mxu0 0
    %871 = vmatpush1.bf16.msra.mxu0 0
    %872 = vmatprep.subr.bf16.mxu0 0
    %873 = vmatpush1.bf16.msra.mxu0 0
    %874 = vmatprep.subr.bf16.mxu0 0
    %875 = vmatpush1.bf16.msra.mxu0 0
    %876 = vmatprep.subr.bf16.mxu0 0
    %877 = vmatpush1.bf16.msra.mxu0 0
    %878 = vmatprep.subr.bf16.mxu0 0
    %879 = vmatpush1.bf16.msra.mxu0 0
    %880 = vmatprep.subr.bf16.mxu0 0
    %881 = vmatpush1.bf16.msra.mxu0 0
    %882 = vmatprep.subr.bf16.mxu0 0
    %883 = vmatpush1.bf16.msra.mxu0 0
    %884 = vmatprep.mubr.bf16.mxu0 0
    %885 = vmatmul.mubr.bf16.gmra.mrb[0].mxu0 %v167
    %v886 = vpop.f32.mrb[0].mxu0
    %v887 = vadd.f32 %v163, %v886
    %v888 = vpop.f32.mrb[0].mxu0
    %v889 = vpop.f32.mrb[0].mxu0
    %v890 = vpop.f32.mrb[0].mxu0
    %891 = vdwg.mxu0
    %v892 = vsel %vm52, %v887, -inf
    %v893 = vrot.slane %v892, 4
    %v894 = vmax.f32 %v892, %v893
    %v895 = vrot.slane %v894, 2
    %v896 = vmax.f32 %v894, %v895
    %v897 = vrot.slane %v896, 1
    %v898 = vmax.f32 %v896, %v897
    %v899 = vsub.f32 %v887, %v898
    %v900 = vmul.f32 %v899, 1.442695
    %v901 = vpow.pop %v900
    %v902 = vsel %vm52, %v901, 0.0
    %v903 = vrot.slane %v902, 4
    %v904 = vadd.f32 %v902, %v903
    %v905 = vrot.slane %v904, 2
    %v906 = vadd.f32 %v904, %v905
    %v907 = vrot.slane %v906, 1
    %v908 = vadd.f32 %v906, %v907
    %v909 = vrcp.pop %v908
    %v910 = vmul.f32 %v901, %v909
    %v911 = vpack.c.bf16 %v910, %v910
    %s912 = scalar_lea.vmem [#allocation2], 12
    %913 = vst [vmem:[%s912] sm:$0x3] %v911
    %s914 = scalar_lea.vmem %s1, 28
    %v915 = vld [vmem:[%s914] sm:$0xf]
    %v916 = vsub.bf16 %v915, %v28
    %v918 = vsel %vm52, %v916, 0
    %920 = vmatprep.subr.bf16.mxu0 0
    %921 = vmatpush1.bf16.msra.mxu0 %v918
    %922 = vmatprep.subr.bf16.mxu0 0
    %923 = vmatpush1.bf16.msra.mxu0 0
    %924 = vmatprep.subr.bf16.mxu0 0
    %925 = vmatpush1.bf16.msra.mxu0 0
    %926 = vmatprep.subr.bf16.mxu0 0
    %927 = vmatpush1.bf16.msra.mxu0 0
    %928 = vmatprep.subr.bf16.mxu0 0
    %929 = vmatpush1.bf16.msra.mxu0 0
    %930 = vmatprep.subr.bf16.mxu0 0
    %931 = vmatpush1.bf16.msra.mxu0 0
    %932 = vmatprep.subr.bf16.mxu0 0
    %933 = vmatpush1.bf16.msra.mxu0 0
    %934 = vmatprep.subr.bf16.mxu0 0
    %935 = vmatpush1.bf16.msra.mxu0 0
    %936 = vmatprep.subr.bf16.mxu0 0
    %937 = vmatpush1.bf16.msra.mxu0 0
    %938 = vmatprep.subr.bf16.mxu0 0
    %939 = vmatpush1.bf16.msra.mxu0 0
    %940 = vmatprep.subr.bf16.mxu0 0
    %941 = vmatpush1.bf16.msra.mxu0 0
    %942 = vmatprep.subr.bf16.mxu0 0
    %943 = vmatpush1.bf16.msra.mxu0 0
    %944 = vmatprep.subr.bf16.mxu0 0
    %945 = vmatpush1.bf16.msra.mxu0 0
    %946 = vmatprep.subr.bf16.mxu0 0
    %947 = vmatpush1.bf16.msra.mxu0 0
    %948 = vmatprep.subr.bf16.mxu0 0
    %949 = vmatpush1.bf16.msra.mxu0 0
    %950 = vmatprep.subr.bf16.mxu0 0
    %951 = vmatpush1.bf16.msra.mxu0 0
    %952 = vmatprep.mubr.bf16.mxu0 0
    %953 = vmatmul.mubr.bf16.gmra.mrb[0].mxu0 %v109
    %v954 = vpop.f32.mrb[0].mxu0
    %v955 = vadd.f32 0.0, %v954
    %v956 = vpop.f32.mrb[0].mxu0
    %v957 = vpop.f32.mrb[0].mxu0
    %v958 = vadd.f32 0.0, %v957
    %v959 = vpop.f32.mrb[0].mxu0
    %960 = vdwg.mxu0
    %v961 = vadd.f32 %v91, %v955
    %v962 = vadd.f32 %v94, %v958
    %v963 = vmax.f32 %v961, 0.0
    %v964 = vmax.f32 %v962, 0.0
    %v965 = vpack.c.bf16 %v964, %v963
    %966 = vmatprep.subr.bf16.mxu0 0
    %967 = vmatpush1.bf16.msra.mxu0 %v965
    %968 = vmatprep.subr.bf16.mxu0 0
    %969 = vmatpush1.bf16.msra.mxu0 0
    %970 = vmatprep.subr.bf16.mxu0 0
    %971 = vmatpush1.bf16.msra.mxu0 0
    %972 = vmatprep.subr.bf16.mxu0 0
    %973 = vmatpush1.bf16.msra.mxu0 0
    %974 = vmatprep.subr.bf16.mxu0 0
    %975 = vmatpush1.bf16.msra.mxu0 0
    %976 = vmatprep.subr.bf16.mxu0 0
    %977 = vmatpush1.bf16.msra.mxu0 0
    %978 = vmatprep.subr.bf16.mxu0 0
    %979 = vmatpush1.bf16.msra.mxu0 0
    %980 = vmatprep.subr.bf16.mxu0 0
    %981 = vmatpush1.bf16.msra.mxu0 0
    %982 = vmatprep.subr.bf16.mxu0 0
    %983 = vmatpush1.bf16.msra.mxu0 0
    %984 = vmatprep.subr.bf16.mxu0 0
    %985 = vmatpush1.bf16.msra.mxu0 0
    %986 = vmatprep.subr.bf16.mxu0 0
    %987 = vmatpush1.bf16.msra.mxu0 0
    %988 = vmatprep.subr.bf16.mxu0 0
    %989 = vmatpush1.bf16.msra.mxu0 0
    %990 = vmatprep.subr.bf16.mxu0 0
    %991 = vmatpush1.bf16.msra.mxu0 0
    %992 = vmatprep.subr.bf16.mxu0 0
    %993 = vmatpush1.bf16.msra.mxu0 0
    %994 = vmatprep.subr.bf16.mxu0 0
    %995 = vmatpush1.bf16.msra.mxu0 0
    %996 = vmatprep.subr.bf16.mxu0 0
    %997 = vmatpush1.bf16.msra.mxu0 0
    %998 = vmatprep.mubr.bf16.mxu0 0
    %999 = vmatmul.mubr.bf16.gmra.mrb[0].mxu0 %v167
    %v1000 = vpop.f32.mrb[0].mxu0
    %v1001 = vadd.f32 %v163, %v1000
    %v1002 = vpop.f32.mrb[0].mxu0
    %v1003 = vpop.f32.mrb[0].mxu0
    %v1004 = vpop.f32.mrb[0].mxu0
    %1005 = vdwg.mxu0
    %v1006 = vsel %vm52, %v1001, -inf
    %v1007 = vrot.slane %v1006, 4
    %v1008 = vmax.f32 %v1006, %v1007
    %v1009 = vrot.slane %v1008, 2
    %v1010 = vmax.f32 %v1008, %v1009
    %v1011 = vrot.slane %v1010, 1
    %v1012 = vmax.f32 %v1010, %v1011
    %v1013 = vsub.f32 %v1001, %v1012
    %v1014 = vmul.f32 %v1013, 1.442695
    %v1015 = vpow.pop %v1014
    %v1016 = vsel %vm52, %v1015, 0.0
    %v1017 = vrot.slane %v1016, 4
    %v1018 = vadd.f32 %v1016, %v1017
    %v1019 = vrot.slane %v1018, 2
    %v1020 = vadd.f32 %v1018, %v1019
    %v1021 = vrot.slane %v1020, 1
    %v1022 = vadd.f32 %v1020, %v1021
    %v1023 = vrcp.pop %v1022
    %v1024 = vmul.f32 %v1015, %v1023
    %v1025 = vpack.c.bf16 %v1024, %v1024
    %s1026 = scalar_lea.vmem [#allocation2], 14
    %1027 = vst [vmem:[%s1026] sm:$0x3] %v1025
    // Predicated region
    $region30: #{tpu_custom_call.1} parent=1 // pred_check
      _
    $region31: #{tpu_custom_call.1} parent=1 // pred_check_branch
      %1029 = sbr.rel (0) target = $region33
    $region32: #{tpu_custom_call.1} parent=1 // pred_region
      %s1031 = ssub.s32 256, 256
      %1032 = vsyncadd [#allocation3], %s1031
      %s1033 = sshll.u32 [#allocation2], 4
      %s1034 = int_to_ptr.vmem [resolvable:$true] %s1033
      %1039 = dma.vmem_to_hbm [thread:$0]  %s1034, 256, %s7, [#allocation3], 32, 32, 2
    $region33: #{tpu_custom_call.1} parent=1 // pred_fallthru
      _
    // Predicated region
    $region34: #{tpu_custom_call.1} parent=1 // pred_check
      _
    $region35: #{tpu_custom_call.1} parent=1 // pred_check_branch
      %1041 = sbr.rel (0) target = $region37
    $region36: #{tpu_custom_call.1} parent=1 // pred_region
      %1042 = dma.done [#allocation3], 256
    $region37: #{tpu_custom_call.1} parent=1 // pred_fallthru
      _
    %1043 = vsyncpa [#allocation3], 1

</llo_original>
